<compile_context>
chip_gen: v5e
topology: v5e:2x2
jax: 0.10.0
libtpu: 0.0.40
codegen_flags: <defaults>
</compile_context>

<pallas_src>
import jax
import jax.numpy as jnp
from jax import lax
from jax.experimental import pallas as pl
from jax.experimental.pallas import tpu as pltpu

NUM_SKEL_ITER = 10   # SoftSkeletonize(num_iter=10) in __init__
ALPHA = 1.0          # default alpha
SMOOTH = 1.0         # self.smooth (clDice terms)
DICE_SMOOTH = 1.0    # hard-coded `smooth = 1` inside soft_dice
LANES = 128          # vreg lane width
_COMPUTE_DTYPE = jnp.float32


# ----------------------------------------------------------------------------
# Pallas kernel: one grid step processes BB lane-packed (H, 128) slices.
# Lane layout per slice: [K true images | K pred images], each W lanes wide.
# ----------------------------------------------------------------------------
def _make_kernel(H, W, half, BB):
  L = 2 * half

  def kernel(x_ref, out_ref):
    # Boundary masks, hoisted once per grid step (shared by all BB slices and
    # all skeleton iterations).
    row = lax.broadcasted_iota(jnp.int32, (H, L), 0)
    col = lax.broadcasted_iota(jnp.int32, (H, L), 1)
    top = row == 0
    bot = row == H - 1
    lft = (col % W) == 0          # per-image left edge (also true/pred seam)
    rgt = (col % W) == W - 1      # per-image right edge

    # Neighbour fetch via XLU roll; at image boundaries the wrapped value is
    # replaced by the centre value (== excluding it for min/max pooling, i.e.
    # exactly the +/-inf padding of F.max_pool2d / -F.max_pool2d(-x)).
    def nb_up(a):     # a[i-1, j]
      return jnp.where(top, a, pltpu.roll(a, 1, 0))

    def nb_down(a):   # a[i+1, j]
      return jnp.where(bot, a, pltpu.roll(a, H - 1, 0))

    def nb_left(a):   # a[i, j-1]
      return jnp.where(lft, a, pltpu.roll(a, 1, 1))

    def nb_right(a):  # a[i, j+1]
      return jnp.where(rgt, a, pltpu.roll(a, L - 1, 1))

    def soft_erode(a):
      # min(-maxpool(-x,(3,1),pad(1,0)), -maxpool(-x,(1,3),pad(0,1)))
      p1 = jnp.minimum(jnp.minimum(nb_up(a), a), nb_down(a))
      p2 = jnp.minimum(jnp.minimum(nb_left(a), a), nb_right(a))
      return jnp.minimum(p1, p2)

    def soft_dilate(a):
      # maxpool(x,(3,3),pad(1,1)) -- separable
      m = jnp.maximum(jnp.maximum(nb_up(a), a), nb_down(a))
      return jnp.maximum(jnp.maximum(nb_left(m), m), nb_right(m))

    def rowsum(a):
      return jnp.sum(a, axis=0, keepdims=True)              # (1, half) f32

    def slice_body(s, acc):
      a_tp, a_t, a_p, a_spt, a_sp, a_stp, a_st = acc

      x = x_ref[s].astype(_COMPUTE_DTYPE)                    # (H, L)
      t_blk = x[:, :half].astype(jnp.float32)
      p_blk = x[:, half:].astype(jnp.float32)

      # Plain-dice partials BEFORE the skeleton loop so x's vregs can retire
      # across the unrolled iterations.
      a_tp = a_tp + rowsum(t_blk * p_blk)
      a_t = a_t + rowsum(t_blk)
      a_p = a_p + rowsum(p_blk)

      # Soft skeletonization of true & pred at once (shared lane axis).
      # Carry (erode(cur), skel): each iteration costs 1 erode + 1 dilate
      # because the erode inside open(cur) is the next iteration's cur.
      e = soft_erode(x)
      skel = jax.nn.relu(x - soft_dilate(e))

      def skel_body(_, carry):
        e_prev, sk = carry
        cur = e_prev                        # == soft_erode(previous cur)
        e_new = soft_erode(cur)
        delta = jax.nn.relu(cur - soft_dilate(e_new))
        sk = sk + jax.nn.relu(delta - sk * delta)
        return e_new, sk

      _, skel = lax.fori_loop(0, NUM_SKEL_ITER, skel_body, (e, skel),
                              unroll=True)

      skel_t = skel[:, :half].astype(jnp.float32)
      skel_p = skel[:, half:].astype(jnp.float32)

      # Re-read true / pred for the cross terms (cheap vld; keeps x dead over
      # the skeleton loop instead of pinned in vregs).
      x2 = x_ref[s].astype(jnp.float32)
      t2 = x2[:, :half]
      p2 = x2[:, half:]

      a_spt = a_spt + rowsum(skel_p * t2)   # sum(skel_pred * y_true)
      a_sp = a_sp + rowsum(skel_p)          # sum(skel_pred)
      a_stp = a_stp + rowsum(skel_t * p2)   # sum(skel_true * y_pred)
      a_st = a_st + rowsum(skel_t)          # sum(skel_true)
      return a_tp, a_t, a_p, a_spt, a_sp, a_stp, a_st

    zrow = jnp.zeros((1, half), jnp.float32)
    acc = lax.fori_loop(0, BB, slice_body, (zrow,) * 7, unroll=False)

    # Store once per grid step: (8, half) row-partials zero-padded to a
    # lane-dense (8, 128) block.  Lane + block sums happen in the wrapper.
    parts = jnp.concatenate(list(acc) + [zrow], axis=0)       # (8, half)
    out_ref[0] = jnp.concatenate(
        [parts, jnp.zeros((8, half), jnp.float32)], axis=1)   # (8, 128)

  return kernel


def _choose_bb(n_slices, H):
  """Largest divisor of n_slices, capped by VMEM budget / 32, keeping the
  grid length >= 2 whenever possible (v7x has 2 TensorCores)."""
  per_buffer_cap = 2 * 1024 * 1024                 # double-buffered input
  cap = max(1, min(32, per_buffer_cap // (H * LANES * 4)))
  best = 1
  for bb in range(1, min(n_slices, cap) + 1):
    if n_slices % bb == 0 and (n_slices // bb >= 2 or n_slices < 2):
      best = bb
  return best


# ----------------------------------------------------------------------------
# Wrapper: lane-dense packing, parallel grid over slice blocks, final scalars.
# ----------------------------------------------------------------------------
@jax.jit
def soft_dice_cldice_loss(y_true, y_pred):
  """y_true, y_pred: float32 NCHW tensors (exclude_background=False)."""
  N, C, H, W = y_true.shape
  G0 = N * C
  # TODO(synk): pad G0 / tile W when they do not divide evenly (general shapes).
  assert LANES % (2 * W) == 0, "W must divide 64 for lane-dense pair packing"
  K = LANES // (2 * W)          # matched (true, pred) image pairs per slice
  assert G0 % K == 0, "N*C must be a multiple of pairs-per-slice"
  S = G0 // K                   # number of lane-packed (H, 128) slices
  half = K * W                  # == 64

  BB = _choose_bb(S, H)         # slices per grid step
  B = S // BB                   # grid length (>= 2 whenever S >= 2)

  # Pack: slice s, row h -> [true imgs sK..sK+K-1 | pred imgs sK..sK+K-1].
  # TODO(synk): this relayout is a separate HBM read+write XLA pass; for very
  # large inputs it could be folded into the producing op or done in bf16.
  t = y_true.astype(jnp.float32).reshape(S, K, H, W)
  p = y_pred.astype(jnp.float32).reshape(S, K, H, W)
  packed = jnp.stack([t, p], axis=1)            # (S, 2, K, H, W)
  packed = packed.transpose(0, 3, 1, 2, 4)      # (S, H, 2, K, W)
  packed = packed.reshape(S, H, 2 * half)       # (S, H, 128) lane-dense

  partials = pl.pallas_call(
      _make_kernel(H, W, half, BB),
      out_shape=jax.ShapeDtypeStruct((B, 8, LANES), jnp.float32),
      grid=(B,),
      in_specs=[pl.BlockSpec((BB, H, LANES), lambda b: (b, 0, 0))],
      out_specs=pl.BlockSpec((1, 8, LANES), lambda b: (b, 0, 0)),
      compiler_params=pltpu.CompilerParams(
          dimension_semantics=("parallel",),     # shard blocks across TCs (v7x)
          vmem_limit_bytes=32 * 1024 * 1024,     # == scoped default on v6e/v7x
      ),
  )(packed)

  # Global sums = sum of per-block, per-lane partials (wrapper side so the
  # grid axis stays "parallel"), then the tiny scalar dice/clDice combination.
  s = jnp.sum(partials[:, :7, :], axis=(0, 2))   # (7,)
  inter, sum_t, sum_p, skp_t, skp, skt_p, skt = (s[i] for i in range(7))

  dice = 1.0 - (2.0 * inter + DICE_SMOOTH) / (sum_t + sum_p + DICE_SMOOTH)
  tprec = (skp_t + SMOOTH) / (skp + SMOOTH)
  tsens = (skt_p + SMOOTH) / (skt + SMOOTH)
  cl_dice = 1.0 - 2.0 * (tprec * tsens) / (tprec + tsens)
  return (1.0 - ALPHA) * dice + ALPHA * cl_dice


# ----------------------------------------------------------------------------
# Pure-JAX (XLA) reference of the original PyTorch math, for validation.
# ----------------------------------------------------------------------------
def _ref_pool3(x, axis, is_max):
  n = x.shape[axis]
  fill = -jnp.inf if is_max else jnp.inf
  pad_shape = list(x.shape)
  pad_shape[axis] = 1
  pad = jnp.full(pad_shape, fill, dtype=x.dtype)
  lo = jnp.concatenate([pad, lax.slice_in_dim(x, 0, n - 1, axis=axis)], axis=axis)
  hi = jnp.concatenate([lax.slice_in_dim(x, 1, n, axis=axis), pad], axis=axis)
  op = jnp.maximum if is_max else jnp.minimum
  return op(op(lo, x), hi)


def _ref_erode(img):
  return jnp.minimum(_ref_pool3(img, 2, False), _ref_pool3(img, 3, False))


def _ref_dilate(img):
  return _ref_pool3(_ref_pool3(img, 2, True), 3, True)


def _ref_open(img):
  return _ref_dilate(_ref_erode(img))


def _ref_skel(img):
  skel = jax.nn.relu(img - _ref_open(img))

  def body(_, carry):
    cur, sk = carry
    cur = _ref_erode(cur)
    delta = jax.nn.relu(cur - _ref_open(cur))
    sk = sk + jax.nn.relu(delta - sk * delta)
    return cur, sk

  _, skel = lax.fori_loop(0, NUM_SKEL_ITER, body, (img, skel))
  return skel


def _ref_loss(y_true, y_pred):
  inter = jnp.sum(y_true * y_pred)
  dice = 1.0 - (2.0 * inter + DICE_SMOOTH) / (
      jnp.sum(y_true) + jnp.sum(y_pred) + DICE_SMOOTH)
  skel_p = _ref_skel(y_pred)
  skel_t = _ref_skel(y_true)
  tprec = (jnp.sum(skel_p * y_true) + SMOOTH) / (jnp.sum(skel_p) + SMOOTH)
  tsens = (jnp.sum(skel_t * y_pred) + SMOOTH) / (jnp.sum(skel_t) + SMOOTH)
  cl_dice = 1.0 - 2.0 * (tprec * tsens) / (tprec + tsens)
  return (1.0 - ALPHA) * dice + ALPHA * cl_dice


if __name__ == "__main__":
  key = jax.random.PRNGKey(0)
  k1, k2 = jax.random.split(key)
  N, C, H, W = 2, 4, 16, 16
  y_true = (jax.random.uniform(k1, (N, C, H, W), jnp.float32) > 0.5).astype(jnp.float32)
  y_pred = jax.random.uniform(k2, (N, C, H, W), jnp.float32)

  loss = jax.block_until_ready(soft_dice_cldice_loss(y_true, y_pred))
  ref = jax.block_until_ready(jax.jit(_ref_loss)(y_true, y_pred))
  assert jnp.allclose(loss, ref, rtol=1e-4, atol=1e-5), (loss, ref)

  print("KERNEL_OK")
</pallas_src>

<mosaic_0001>
module attributes {stable_mosaic.version = 11 : i64} {
  func.func @kernel(%arg0: i32, %arg1: memref<1x16x128xf32, #tpu.memory_space<vmem>>, %arg2: memref<1x8x128xf32, #tpu.memory_space<vmem>>) attributes {dimension_semantics = [#tpu.dimension_semantics<parallel>], iteration_bounds = array<i64: 2>, scalar_prefetch = 0 : i64, scratch_operands = 0 : i64, tpu.core_type = #tpu.core_type<tc>, window_params = [{transform_indices = @transform_0, window_bounds = array<i64: 1, 16, 128>}, {transform_indices = @transform_1, window_bounds = array<i64: 1, 8, 128>}]} {
    %0 = tpu.iota {dimensions = array<i32: 0>} : vector<16x128xi32>
    %1 = tpu.iota {dimensions = array<i32: 1>} : vector<16x128xi32>
    %c0_i32 = arith.constant 0 : i32
    %2 = vector.broadcast %c0_i32 : i32 to vector<16x128xi32>
    %3 = arith.cmpi eq, %0, %2 : vector<16x128xi32>
    %c15_i32 = arith.constant 15 : i32
    %4 = vector.broadcast %c15_i32 : i32 to vector<16x128xi32>
    %5 = arith.cmpi eq, %0, %4 : vector<16x128xi32>
    %c16_i32 = arith.constant 16 : i32
    %c0_i32_0 = arith.constant 0 : i32
    %6 = arith.cmpi eq, %c16_i32, %c0_i32_0 : i32
    %c1_i32 = arith.constant 1 : i32
    %7 = arith.select %6, %c1_i32, %c16_i32 : i32
    %8 = vector.broadcast %7 : i32 to vector<16x128xi32>
    %9 = arith.remsi %1, %8 : vector<16x128xi32>
    %c0_i32_1 = arith.constant 0 : i32
    %10 = vector.broadcast %c0_i32_1 : i32 to vector<16x128xi32>
    %11 = arith.cmpi ne, %9, %10 : vector<16x128xi32>
    %c0_i32_2 = arith.constant 0 : i32
    %12 = vector.broadcast %c0_i32_2 : i32 to vector<16x128xi32>
    %13 = arith.cmpi slt, %9, %12 : vector<16x128xi32>
    %c0_i32_3 = arith.constant 0 : i32
    %14 = arith.cmpi slt, %7, %c0_i32_3 : i32
    %15 = vector.broadcast %14 : i1 to vector<16x128xi1>
    %16 = vector.broadcast %15 : vector<16x128xi1> to vector<16x128xi1>
    %17 = arith.xori %13, %16 : vector<16x128xi1>
    %18 = arith.andi %17, %11 : vector<16x128xi1>
    %19 = vector.broadcast %7 : i32 to vector<16x128xi32>
    %20 = arith.addi %9, %19 : vector<16x128xi32>
    %21 = arith.select %18, %20, %9 : vector<16x128xi1>, vector<16x128xi32>
    %c0_i32_4 = arith.constant 0 : i32
    %22 = vector.broadcast %c0_i32_4 : i32 to vector<16x128xi32>
    %23 = arith.cmpi eq, %21, %22 : vector<16x128xi32>
    %c16_i32_5 = arith.constant 16 : i32
    %c0_i32_6 = arith.constant 0 : i32
    %24 = arith.cmpi eq, %c16_i32_5, %c0_i32_6 : i32
    %c1_i32_7 = arith.constant 1 : i32
    %25 = arith.select %24, %c1_i32_7, %c16_i32_5 : i32
    %26 = vector.broadcast %25 : i32 to vector<16x128xi32>
    %27 = arith.remsi %1, %26 : vector<16x128xi32>
    %c0_i32_8 = arith.constant 0 : i32
    %28 = vector.broadcast %c0_i32_8 : i32 to vector<16x128xi32>
    %29 = arith.cmpi ne, %27, %28 : vector<16x128xi32>
    %c0_i32_9 = arith.constant 0 : i32
    %30 = vector.broadcast %c0_i32_9 : i32 to vector<16x128xi32>
    %31 = arith.cmpi slt, %27, %30 : vector<16x128xi32>
    %c0_i32_10 = arith.constant 0 : i32
    %32 = arith.cmpi slt, %25, %c0_i32_10 : i32
    %33 = vector.broadcast %32 : i1 to vector<16x128xi1>
    %34 = vector.broadcast %33 : vector<16x128xi1> to vector<16x128xi1>
    %35 = arith.xori %31, %34 : vector<16x128xi1>
    %36 = arith.andi %35, %29 : vector<16x128xi1>
    %37 = vector.broadcast %25 : i32 to vector<16x128xi32>
    %38 = arith.addi %27, %37 : vector<16x128xi32>
    %39 = arith.select %36, %38, %27 : vector<16x128xi1>, vector<16x128xi32>
    %c15_i32_11 = arith.constant 15 : i32
    %40 = vector.broadcast %c15_i32_11 : i32 to vector<16x128xi32>
    %41 = arith.cmpi eq, %39, %40 : vector<16x128xi32>
    %cst = arith.constant 0.000000e+00 : f32
    %42 = vector.broadcast %cst : f32 to vector<1x64xf32>
    %c0_i32_12 = arith.constant 0 : i32
    %43 = arith.index_cast %c0_i32_12 : i32 to index
    %c0 = arith.constant 0 : index
    %c0_13 = arith.constant 0 : index
    %44 = vector.load %arg1[%43, %c0, %c0_13] : memref<1x16x128xf32, #tpu.memory_space<vmem>>, vector<1x16x128xf32>
    %45 = vector.shape_cast %44 : vector<1x16x128xf32> to vector<16x128xf32>
    %46 = vector.extract_strided_slice %45 {offsets = [0, 0], sizes = [16, 64], strides = [1, 1]} : vector<16x128xf32> to vector<16x64xf32>
    %47 = vector.extract_strided_slice %45 {offsets = [0, 64], sizes = [16, 64], strides = [1, 1]} : vector<16x128xf32> to vector<16x64xf32>
    %48 = arith.mulf %46, %47 : vector<16x64xf32>
    %cst_14 = arith.constant dense<0.000000e+00> : vector<64xf32>
    %49 = vector.multi_reduction <add>, %48, %cst_14 [0] : vector<16x64xf32> to vector<64xf32>
    %50 = vector.shape_cast %49 : vector<64xf32> to vector<1x64xf32>
    %51 = arith.addf %42, %50 : vector<1x64xf32>
    %cst_15 = arith.constant dense<0.000000e+00> : vector<64xf32>
    %52 = vector.multi_reduction <add>, %46, %cst_15 [0] : vector<16x64xf32> to vector<64xf32>
    %53 = vector.shape_cast %52 : vector<64xf32> to vector<1x64xf32>
    %54 = arith.addf %42, %53 : vector<1x64xf32>
    %cst_16 = arith.constant dense<0.000000e+00> : vector<64xf32>
    %55 = vector.multi_reduction <add>, %47, %cst_16 [0] : vector<16x64xf32> to vector<64xf32>
    %56 = vector.shape_cast %55 : vector<64xf32> to vector<1x64xf32>
    %57 = arith.addf %42, %56 : vector<1x64xf32>
    %c1_i32_17 = arith.constant 1 : i32
    %58 = tpu.dynamic_rotate %45 by %c1_i32_17 dim 0 : vector<16x128xf32>, i32 -> vector<16x128xf32>
    %59 = arith.select %3, %45, %58 : vector<16x128xi1>, vector<16x128xf32>
    %60 = arith.minimumf %59, %45 : vector<16x128xf32>
    %c15_i32_18 = arith.constant 15 : i32
    %61 = tpu.dynamic_rotate %45 by %c15_i32_18 dim 0 : vector<16x128xf32>, i32 -> vector<16x128xf32>
    %62 = arith.select %5, %45, %61 : vector<16x128xi1>, vector<16x128xf32>
    %63 = arith.minimumf %60, %62 : vector<16x128xf32>
    %c1_i32_19 = arith.constant 1 : i32
    %64 = tpu.dynamic_rotate %45 by %c1_i32_19 dim 1 : vector<16x128xf32>, i32 -> vector<16x128xf32>
    %65 = arith.select %23, %45, %64 : vector<16x128xi1>, vector<16x128xf32>
    %66 = arith.minimumf %65, %45 : vector<16x128xf32>
    %c127_i32 = arith.constant 127 : i32
    %67 = tpu.dynamic_rotate %45 by %c127_i32 dim 1 : vector<16x128xf32>, i32 -> vector<16x128xf32>
    %68 = arith.select %41, %45, %67 : vector<16x128xi1>, vector<16x128xf32>
    %69 = arith.minimumf %66, %68 : vector<16x128xf32>
    %70 = arith.minimumf %63, %69 : vector<16x128xf32>
    %c1_i32_20 = arith.constant 1 : i32
    %71 = tpu.dynamic_rotate %70 by %c1_i32_20 dim 0 : vector<16x128xf32>, i32 -> vector<16x128xf32>
    %72 = arith.select %3, %70, %71 : vector<16x128xi1>, vector<16x128xf32>
    %73 = arith.maximumf %72, %70 : vector<16x128xf32>
    %c15_i32_21 = arith.constant 15 : i32
    %74 = tpu.dynamic_rotate %70 by %c15_i32_21 dim 0 : vector<16x128xf32>, i32 -> vector<16x128xf32>
    %75 = arith.select %5, %70, %74 : vector<16x128xi1>, vector<16x128xf32>
    %76 = arith.maximumf %73, %75 : vector<16x128xf32>
    %c1_i32_22 = arith.constant 1 : i32
    %77 = tpu.dynamic_rotate %76 by %c1_i32_22 dim 1 : vector<16x128xf32>, i32 -> vector<16x128xf32>
    %78 = arith.select %23, %76, %77 : vector<16x128xi1>, vector<16x128xf32>
    %79 = arith.maximumf %78, %76 : vector<16x128xf32>
    %c127_i32_23 = arith.constant 127 : i32
    %80 = tpu.dynamic_rotate %76 by %c127_i32_23 dim 1 : vector<16x128xf32>, i32 -> vector<16x128xf32>
    %81 = arith.select %41, %76, %80 : vector<16x128xi1>, vector<16x128xf32>
    %82 = arith.maximumf %79, %81 : vector<16x128xf32>
    %83 = arith.subf %45, %82 : vector<16x128xf32>
    %cst_24 = arith.constant 0.000000e+00 : f32
    %84 = vector.broadcast %cst_24 : f32 to vector<16x128xf32>
    %85 = arith.maximumf %83, %84 : vector<16x128xf32>
    %c0_i32_25 = arith.constant 0 : i32
    %c1_i32_26 = arith.constant 1 : i32
    %86 = tpu.dynamic_rotate %70 by %c1_i32_26 dim 0 : vector<16x128xf32>, i32 -> vector<16x128xf32>
    %87 = arith.select %3, %70, %86 : vector<16x128xi1>, vector<16x128xf32>
    %88 = arith.minimumf %87, %70 : vector<16x128xf32>
    %c15_i32_27 = arith.constant 15 : i32
    %89 = tpu.dynamic_rotate %70 by %c15_i32_27 dim 0 : vector<16x128xf32>, i32 -> vector<16x128xf32>
    %90 = arith.select %5, %70, %89 : vector<16x128xi1>, vector<16x128xf32>
    %91 = arith.minimumf %88, %90 : vector<16x128xf32>
    %c1_i32_28 = arith.constant 1 : i32
    %92 = tpu.dynamic_rotate %70 by %c1_i32_28 dim 1 : vector<16x128xf32>, i32 -> vector<16x128xf32>
    %93 = arith.select %23, %70, %92 : vector<16x128xi1>, vector<16x128xf32>
    %94 = arith.minimumf %93, %70 : vector<16x128xf32>
    %c127_i32_29 = arith.constant 127 : i32
    %95 = tpu.dynamic_rotate %70 by %c127_i32_29 dim 1 : vector<16x128xf32>, i32 -> vector<16x128xf32>
    %96 = arith.select %41, %70, %95 : vector<16x128xi1>, vector<16x128xf32>
    %97 = arith.minimumf %94, %96 : vector<16x128xf32>
    %98 = arith.minimumf %91, %97 : vector<16x128xf32>
    %c1_i32_30 = arith.constant 1 : i32
    %99 = tpu.dynamic_rotate %98 by %c1_i32_30 dim 0 : vector<16x128xf32>, i32 -> vector<16x128xf32>
    %100 = arith.select %3, %98, %99 : vector<16x128xi1>, vector<16x128xf32>
    %101 = arith.maximumf %100, %98 : vector<16x128xf32>
    %c15_i32_31 = arith.constant 15 : i32
    %102 = tpu.dynamic_rotate %98 by %c15_i32_31 dim 0 : vector<16x128xf32>, i32 -> vector<16x128xf32>
    %103 = arith.select %5, %98, %102 : vector<16x128xi1>, vector<16x128xf32>
    %104 = arith.maximumf %101, %103 : vector<16x128xf32>
    %c1_i32_32 = arith.constant 1 : i32
    %105 = tpu.dynamic_rotate %104 by %c1_i32_32 dim 1 : vector<16x128xf32>, i32 -> vector<16x128xf32>
    %106 = arith.select %23, %104, %105 : vector<16x128xi1>, vector<16x128xf32>
    %107 = arith.maximumf %106, %104 : vector<16x128xf32>
    %c127_i32_33 = arith.constant 127 : i32
    %108 = tpu.dynamic_rotate %104 by %c127_i32_33 dim 1 : vector<16x128xf32>, i32 -> vector<16x128xf32>
    %109 = arith.select %41, %104, %108 : vector<16x128xi1>, vector<16x128xf32>
    %110 = arith.maximumf %107, %109 : vector<16x128xf32>
    %111 = arith.subf %70, %110 : vector<16x128xf32>
    %cst_34 = arith.constant 0.000000e+00 : f32
    %112 = vector.broadcast %cst_34 : f32 to vector<16x128xf32>
    %113 = arith.maximumf %111, %112 : vector<16x128xf32>
    %114 = arith.mulf %85, %113 : vector<16x128xf32>
    %115 = arith.subf %113, %114 : vector<16x128xf32>
    %cst_35 = arith.constant 0.000000e+00 : f32
    %116 = vector.broadcast %cst_35 : f32 to vector<16x128xf32>
    %117 = arith.maximumf %115, %116 : vector<16x128xf32>
    %118 = arith.addf %85, %117 : vector<16x128xf32>
    %c1_i32_36 = arith.constant 1 : i32
    %c1_i32_37 = arith.constant 1 : i32
    %119 = tpu.dynamic_rotate %98 by %c1_i32_37 dim 0 : vector<16x128xf32>, i32 -> vector<16x128xf32>
    %120 = arith.select %3, %98, %119 : vector<16x128xi1>, vector<16x128xf32>
    %121 = arith.minimumf %120, %98 : vector<16x128xf32>
    %c15_i32_38 = arith.constant 15 : i32
    %122 = tpu.dynamic_rotate %98 by %c15_i32_38 dim 0 : vector<16x128xf32>, i32 -> vector<16x128xf32>
    %123 = arith.select %5, %98, %122 : vector<16x128xi1>, vector<16x128xf32>
    %124 = arith.minimumf %121, %123 : vector<16x128xf32>
    %c1_i32_39 = arith.constant 1 : i32
    %125 = tpu.dynamic_rotate %98 by %c1_i32_39 dim 1 : vector<16x128xf32>, i32 -> vector<16x128xf32>
    %126 = arith.select %23, %98, %125 : vector<16x128xi1>, vector<16x128xf32>
    %127 = arith.minimumf %126, %98 : vector<16x128xf32>
    %c127_i32_40 = arith.constant 127 : i32
    %128 = tpu.dynamic_rotate %98 by %c127_i32_40 dim 1 : vector<16x128xf32>, i32 -> vector<16x128xf32>
    %129 = arith.select %41, %98, %128 : vector<16x128xi1>, vector<16x128xf32>
    %130 = arith.minimumf %127, %129 : vector<16x128xf32>
    %131 = arith.minimumf %124, %130 : vector<16x128xf32>
    %c1_i32_41 = arith.constant 1 : i32
    %132 = tpu.dynamic_rotate %131 by %c1_i32_41 dim 0 : vector<16x128xf32>, i32 -> vector<16x128xf32>
    %133 = arith.select %3, %131, %132 : vector<16x128xi1>, vector<16x128xf32>
    %134 = arith.maximumf %133, %131 : vector<16x128xf32>
    %c15_i32_42 = arith.constant 15 : i32
    %135 = tpu.dynamic_rotate %131 by %c15_i32_42 dim 0 : vector<16x128xf32>, i32 -> vector<16x128xf32>
    %136 = arith.select %5, %131, %135 : vector<16x128xi1>, vector<16x128xf32>
    %137 = arith.maximumf %134, %136 : vector<16x128xf32>
    %c1_i32_43 = arith.constant 1 : i32
    %138 = tpu.dynamic_rotate %137 by %c1_i32_43 dim 1 : vector<16x128xf32>, i32 -> vector<16x128xf32>
    %139 = arith.select %23, %137, %138 : vector<16x128xi1>, vector<16x128xf32>
    %140 = arith.maximumf %139, %137 : vector<16x128xf32>
    %c127_i32_44 = arith.constant 127 : i32
    %141 = tpu.dynamic_rotate %137 by %c127_i32_44 dim 1 : vector<16x128xf32>, i32 -> vector<16x128xf32>
    %142 = arith.select %41, %137, %141 : vector<16x128xi1>, vector<16x128xf32>
    %143 = arith.maximumf %140, %142 : vector<16x128xf32>
    %144 = arith.subf %98, %143 : vector<16x128xf32>
    %cst_45 = arith.constant 0.000000e+00 : f32
    %145 = vector.broadcast %cst_45 : f32 to vector<16x128xf32>
    %146 = arith.maximumf %144, %145 : vector<16x128xf32>
    %147 = arith.mulf %118, %146 : vector<16x128xf32>
    %148 = arith.subf %146, %147 : vector<16x128xf32>
    %cst_46 = arith.constant 0.000000e+00 : f32
    %149 = vector.broadcast %cst_46 : f32 to vector<16x128xf32>
    %150 = arith.maximumf %148, %149 : vector<16x128xf32>
    %151 = arith.addf %118, %150 : vector<16x128xf32>
    %c2_i32 = arith.constant 2 : i32
    %c1_i32_47 = arith.constant 1 : i32
    %152 = tpu.dynamic_rotate %131 by %c1_i32_47 dim 0 : vector<16x128xf32>, i32 -> vector<16x128xf32>
    %153 = arith.select %3, %131, %152 : vector<16x128xi1>, vector<16x128xf32>
    %154 = arith.minimumf %153, %131 : vector<16x128xf32>
    %c15_i32_48 = arith.constant 15 : i32
    %155 = tpu.dynamic_rotate %131 by %c15_i32_48 dim 0 : vector<16x128xf32>, i32 -> vector<16x128xf32>
    %156 = arith.select %5, %131, %155 : vector<16x128xi1>, vector<16x128xf32>
    %157 = arith.minimumf %154, %156 : vector<16x128xf32>
    %c1_i32_49 = arith.constant 1 : i32
    %158 = tpu.dynamic_rotate %131 by %c1_i32_49 dim 1 : vector<16x128xf32>, i32 -> vector<16x128xf32>
    %159 = arith.select %23, %131, %158 : vector<16x128xi1>, vector<16x128xf32>
    %160 = arith.minimumf %159, %131 : vector<16x128xf32>
    %c127_i32_50 = arith.constant 127 : i32
    %161 = tpu.dynamic_rotate %131 by %c127_i32_50 dim 1 : vector<16x128xf32>, i32 -> vector<16x128xf32>
    %162 = arith.select %41, %131, %161 : vector<16x128xi1>, vector<16x128xf32>
    %163 = arith.minimumf %160, %162 : vector<16x128xf32>
    %164 = arith.minimumf %157, %163 : vector<16x128xf32>
    %c1_i32_51 = arith.constant 1 : i32
    %165 = tpu.dynamic_rotate %164 by %c1_i32_51 dim 0 : vector<16x128xf32>, i32 -> vector<16x128xf32>
    %166 = arith.select %3, %164, %165 : vector<16x128xi1>, vector<16x128xf32>
    %167 = arith.maximumf %166, %164 : vector<16x128xf32>
    %c15_i32_52 = arith.constant 15 : i32
    %168 = tpu.dynamic_rotate %164 by %c15_i32_52 dim 0 : vector<16x128xf32>, i32 -> vector<16x128xf32>
    %169 = arith.select %5, %164, %168 : vector<16x128xi1>, vector<16x128xf32>
    %170 = arith.maximumf %167, %169 : vector<16x128xf32>
    %c1_i32_53 = arith.constant 1 : i32
    %171 = tpu.dynamic_rotate %170 by %c1_i32_53 dim 1 : vector<16x128xf32>, i32 -> vector<16x128xf32>
    %172 = arith.select %23, %170, %171 : vector<16x128xi1>, vector<16x128xf32>
    %173 = arith.maximumf %172, %170 : vector<16x128xf32>
    %c127_i32_54 = arith.constant 127 : i32
    %174 = tpu.dynamic_rotate %170 by %c127_i32_54 dim 1 : vector<16x128xf32>, i32 -> vector<16x128xf32>
    %175 = arith.select %41, %170, %174 : vector<16x128xi1>, vector<16x128xf32>
    %176 = arith.maximumf %173, %175 : vector<16x128xf32>
    %177 = arith.subf %131, %176 : vector<16x128xf32>
    %cst_55 = arith.constant 0.000000e+00 : f32
    %178 = vector.broadcast %cst_55 : f32 to vector<16x128xf32>
    %179 = arith.maximumf %177, %178 : vector<16x128xf32>
    %180 = arith.mulf %151, %179 : vector<16x128xf32>
    %181 = arith.subf %179, %180 : vector<16x128xf32>
    %cst_56 = arith.constant 0.000000e+00 : f32
    %182 = vector.broadcast %cst_56 : f32 to vector<16x128xf32>
    %183 = arith.maximumf %181, %182 : vector<16x128xf32>
    %184 = arith.addf %151, %183 : vector<16x128xf32>
    %c3_i32 = arith.constant 3 : i32
    %c1_i32_57 = arith.constant 1 : i32
    %185 = tpu.dynamic_rotate %164 by %c1_i32_57 dim 0 : vector<16x128xf32>, i32 -> vector<16x128xf32>
    %186 = arith.select %3, %164, %185 : vector<16x128xi1>, vector<16x128xf32>
    %187 = arith.minimumf %186, %164 : vector<16x128xf32>
    %c15_i32_58 = arith.constant 15 : i32
    %188 = tpu.dynamic_rotate %164 by %c15_i32_58 dim 0 : vector<16x128xf32>, i32 -> vector<16x128xf32>
    %189 = arith.select %5, %164, %188 : vector<16x128xi1>, vector<16x128xf32>
    %190 = arith.minimumf %187, %189 : vector<16x128xf32>
    %c1_i32_59 = arith.constant 1 : i32
    %191 = tpu.dynamic_rotate %164 by %c1_i32_59 dim 1 : vector<16x128xf32>, i32 -> vector<16x128xf32>
    %192 = arith.select %23, %164, %191 : vector<16x128xi1>, vector<16x128xf32>
    %193 = arith.minimumf %192, %164 : vector<16x128xf32>
    %c127_i32_60 = arith.constant 127 : i32
    %194 = tpu.dynamic_rotate %164 by %c127_i32_60 dim 1 : vector<16x128xf32>, i32 -> vector<16x128xf32>
    %195 = arith.select %41, %164, %194 : vector<16x128xi1>, vector<16x128xf32>
    %196 = arith.minimumf %193, %195 : vector<16x128xf32>
    %197 = arith.minimumf %190, %196 : vector<16x128xf32>
    %c1_i32_61 = arith.constant 1 : i32
    %198 = tpu.dynamic_rotate %197 by %c1_i32_61 dim 0 : vector<16x128xf32>, i32 -> vector<16x128xf32>
    %199 = arith.select %3, %197, %198 : vector<16x128xi1>, vector<16x128xf32>
    %200 = arith.maximumf %199, %197 : vector<16x128xf32>
    %c15_i32_62 = arith.constant 15 : i32
    %201 = tpu.dynamic_rotate %197 by %c15_i32_62 dim 0 : vector<16x128xf32>, i32 -> vector<16x128xf32>
    %202 = arith.select %5, %197, %201 : vector<16x128xi1>, vector<16x128xf32>
    %203 = arith.maximumf %200, %202 : vector<16x128xf32>
    %c1_i32_63 = arith.constant 1 : i32
    %204 = tpu.dynamic_rotate %203 by %c1_i32_63 dim 1 : vector<16x128xf32>, i32 -> vector<16x128xf32>
    %205 = arith.select %23, %203, %204 : vector<16x128xi1>, vector<16x128xf32>
    %206 = arith.maximumf %205, %203 : vector<16x128xf32>
    %c127_i32_64 = arith.constant 127 : i32
    %207 = tpu.dynamic_rotate %203 by %c127_i32_64 dim 1 : vector<16x128xf32>, i32 -> vector<16x128xf32>
    %208 = arith.select %41, %203, %207 : vector<16x128xi1>, vector<16x128xf32>
    %209 = arith.maximumf %206, %208 : vector<16x128xf32>
    %210 = arith.subf %164, %209 : vector<16x128xf32>
    %cst_65 = arith.constant 0.000000e+00 : f32
    %211 = vector.broadcast %cst_65 : f32 to vector<16x128xf32>
    %212 = arith.maximumf %210, %211 : vector<16x128xf32>
    %213 = arith.mulf %184, %212 : vector<16x128xf32>
    %214 = arith.subf %212, %213 : vector<16x128xf32>
    %cst_66 = arith.constant 0.000000e+00 : f32
    %215 = vector.broadcast %cst_66 : f32 to vector<16x128xf32>
    %216 = arith.maximumf %214, %215 : vector<16x128xf32>
    %217 = arith.addf %184, %216 : vector<16x128xf32>
    %c4_i32 = arith.constant 4 : i32
    %c1_i32_67 = arith.constant 1 : i32
    %218 = tpu.dynamic_rotate %197 by %c1_i32_67 dim 0 : vector<16x128xf32>, i32 -> vector<16x128xf32>
    %219 = arith.select %3, %197, %218 : vector<16x128xi1>, vector<16x128xf32>
    %220 = arith.minimumf %219, %197 : vector<16x128xf32>
    %c15_i32_68 = arith.constant 15 : i32
    %221 = tpu.dynamic_rotate %197 by %c15_i32_68 dim 0 : vector<16x128xf32>, i32 -> vector<16x128xf32>
    %222 = arith.select %5, %197, %221 : vector<16x128xi1>, vector<16x128xf32>
    %223 = arith.minimumf %220, %222 : vector<16x128xf32>
    %c1_i32_69 = arith.constant 1 : i32
    %224 = tpu.dynamic_rotate %197 by %c1_i32_69 dim 1 : vector<16x128xf32>, i32 -> vector<16x128xf32>
    %225 = arith.select %23, %197, %224 : vector<16x128xi1>, vector<16x128xf32>
    %226 = arith.minimumf %225, %197 : vector<16x128xf32>
    %c127_i32_70 = arith.constant 127 : i32
    %227 = tpu.dynamic_rotate %197 by %c127_i32_70 dim 1 : vector<16x128xf32>, i32 -> vector<16x128xf32>
    %228 = arith.select %41, %197, %227 : vector<16x128xi1>, vector<16x128xf32>
    %229 = arith.minimumf %226, %228 : vector<16x128xf32>
    %230 = arith.minimumf %223, %229 : vector<16x128xf32>
    %c1_i32_71 = arith.constant 1 : i32
    %231 = tpu.dynamic_rotate %230 by %c1_i32_71 dim 0 : vector<16x128xf32>, i32 -> vector<16x128xf32>
    %232 = arith.select %3, %230, %231 : vector<16x128xi1>, vector<16x128xf32>
    %233 = arith.maximumf %232, %230 : vector<16x128xf32>
    %c15_i32_72 = arith.constant 15 : i32
    %234 = tpu.dynamic_rotate %230 by %c15_i32_72 dim 0 : vector<16x128xf32>, i32 -> vector<16x128xf32>
    %235 = arith.select %5, %230, %234 : vector<16x128xi1>, vector<16x128xf32>
    %236 = arith.maximumf %233, %235 : vector<16x128xf32>
    %c1_i32_73 = arith.constant 1 : i32
    %237 = tpu.dynamic_rotate %236 by %c1_i32_73 dim 1 : vector<16x128xf32>, i32 -> vector<16x128xf32>
    %238 = arith.select %23, %236, %237 : vector<16x128xi1>, vector<16x128xf32>
    %239 = arith.maximumf %238, %236 : vector<16x128xf32>
    %c127_i32_74 = arith.constant 127 : i32
    %240 = tpu.dynamic_rotate %236 by %c127_i32_74 dim 1 : vector<16x128xf32>, i32 -> vector<16x128xf32>
    %241 = arith.select %41, %236, %240 : vector<16x128xi1>, vector<16x128xf32>
    %242 = arith.maximumf %239, %241 : vector<16x128xf32>
    %243 = arith.subf %197, %242 : vector<16x128xf32>
    %cst_75 = arith.constant 0.000000e+00 : f32
    %244 = vector.broadcast %cst_75 : f32 to vector<16x128xf32>
    %245 = arith.maximumf %243, %244 : vector<16x128xf32>
    %246 = arith.mulf %217, %245 : vector<16x128xf32>
    %247 = arith.subf %245, %246 : vector<16x128xf32>
    %cst_76 = arith.constant 0.000000e+00 : f32
    %248 = vector.broadcast %cst_76 : f32 to vector<16x128xf32>
    %249 = arith.maximumf %247, %248 : vector<16x128xf32>
    %250 = arith.addf %217, %249 : vector<16x128xf32>
    %c5_i32 = arith.constant 5 : i32
    %c1_i32_77 = arith.constant 1 : i32
    %251 = tpu.dynamic_rotate %230 by %c1_i32_77 dim 0 : vector<16x128xf32>, i32 -> vector<16x128xf32>
    %252 = arith.select %3, %230, %251 : vector<16x128xi1>, vector<16x128xf32>
    %253 = arith.minimumf %252, %230 : vector<16x128xf32>
    %c15_i32_78 = arith.constant 15 : i32
    %254 = tpu.dynamic_rotate %230 by %c15_i32_78 dim 0 : vector<16x128xf32>, i32 -> vector<16x128xf32>
    %255 = arith.select %5, %230, %254 : vector<16x128xi1>, vector<16x128xf32>
    %256 = arith.minimumf %253, %255 : vector<16x128xf32>
    %c1_i32_79 = arith.constant 1 : i32
    %257 = tpu.dynamic_rotate %230 by %c1_i32_79 dim 1 : vector<16x128xf32>, i32 -> vector<16x128xf32>
    %258 = arith.select %23, %230, %257 : vector<16x128xi1>, vector<16x128xf32>
    %259 = arith.minimumf %258, %230 : vector<16x128xf32>
    %c127_i32_80 = arith.constant 127 : i32
    %260 = tpu.dynamic_rotate %230 by %c127_i32_80 dim 1 : vector<16x128xf32>, i32 -> vector<16x128xf32>
    %261 = arith.select %41, %230, %260 : vector<16x128xi1>, vector<16x128xf32>
    %262 = arith.minimumf %259, %261 : vector<16x128xf32>
    %263 = arith.minimumf %256, %262 : vector<16x128xf32>
    %c1_i32_81 = arith.constant 1 : i32
    %264 = tpu.dynamic_rotate %263 by %c1_i32_81 dim 0 : vector<16x128xf32>, i32 -> vector<16x128xf32>
    %265 = arith.select %3, %263, %264 : vector<16x128xi1>, vector<16x128xf32>
    %266 = arith.maximumf %265, %263 : vector<16x128xf32>
    %c15_i32_82 = arith.constant 15 : i32
    %267 = tpu.dynamic_rotate %263 by %c15_i32_82 dim 0 : vector<16x128xf32>, i32 -> vector<16x128xf32>
    %268 = arith.select %5, %263, %267 : vector<16x128xi1>, vector<16x128xf32>
    %269 = arith.maximumf %266, %268 : vector<16x128xf32>
    %c1_i32_83 = arith.constant 1 : i32
    %270 = tpu.dynamic_rotate %269 by %c1_i32_83 dim 1 : vector<16x128xf32>, i32 -> vector<16x128xf32>
    %271 = arith.select %23, %269, %270 : vector<16x128xi1>, vector<16x128xf32>
    %272 = arith.maximumf %271, %269 : vector<16x128xf32>
    %c127_i32_84 = arith.constant 127 : i32
    %273 = tpu.dynamic_rotate %269 by %c127_i32_84 dim 1 : vector<16x128xf32>, i32 -> vector<16x128xf32>
    %274 = arith.select %41, %269, %273 : vector<16x128xi1>, vector<16x128xf32>
    %275 = arith.maximumf %272, %274 : vector<16x128xf32>
    %276 = arith.subf %230, %275 : vector<16x128xf32>
    %cst_85 = arith.constant 0.000000e+00 : f32
    %277 = vector.broadcast %cst_85 : f32 to vector<16x128xf32>
    %278 = arith.maximumf %276, %277 : vector<16x128xf32>
    %279 = arith.mulf %250, %278 : vector<16x128xf32>
    %280 = arith.subf %278, %279 : vector<16x128xf32>
    %cst_86 = arith.constant 0.000000e+00 : f32
    %281 = vector.broadcast %cst_86 : f32 to vector<16x128xf32>
    %282 = arith.maximumf %280, %281 : vector<16x128xf32>
    %283 = arith.addf %250, %282 : vector<16x128xf32>
    %c6_i32 = arith.constant 6 : i32
    %c1_i32_87 = arith.constant 1 : i32
    %284 = tpu.dynamic_rotate %263 by %c1_i32_87 dim 0 : vector<16x128xf32>, i32 -> vector<16x128xf32>
    %285 = arith.select %3, %263, %284 : vector<16x128xi1>, vector<16x128xf32>
    %286 = arith.minimumf %285, %263 : vector<16x128xf32>
    %c15_i32_88 = arith.constant 15 : i32
    %287 = tpu.dynamic_rotate %263 by %c15_i32_88 dim 0 : vector<16x128xf32>, i32 -> vector<16x128xf32>
    %288 = arith.select %5, %263, %287 : vector<16x128xi1>, vector<16x128xf32>
    %289 = arith.minimumf %286, %288 : vector<16x128xf32>
    %c1_i32_89 = arith.constant 1 : i32
    %290 = tpu.dynamic_rotate %263 by %c1_i32_89 dim 1 : vector<16x128xf32>, i32 -> vector<16x128xf32>
    %291 = arith.select %23, %263, %290 : vector<16x128xi1>, vector<16x128xf32>
    %292 = arith.minimumf %291, %263 : vector<16x128xf32>
    %c127_i32_90 = arith.constant 127 : i32
    %293 = tpu.dynamic_rotate %263 by %c127_i32_90 dim 1 : vector<16x128xf32>, i32 -> vector<16x128xf32>
    %294 = arith.select %41, %263, %293 : vector<16x128xi1>, vector<16x128xf32>
    %295 = arith.minimumf %292, %294 : vector<16x128xf32>
    %296 = arith.minimumf %289, %295 : vector<16x128xf32>
    %c1_i32_91 = arith.constant 1 : i32
    %297 = tpu.dynamic_rotate %296 by %c1_i32_91 dim 0 : vector<16x128xf32>, i32 -> vector<16x128xf32>
    %298 = arith.select %3, %296, %297 : vector<16x128xi1>, vector<16x128xf32>
    %299 = arith.maximumf %298, %296 : vector<16x128xf32>
    %c15_i32_92 = arith.constant 15 : i32
    %300 = tpu.dynamic_rotate %296 by %c15_i32_92 dim 0 : vector<16x128xf32>, i32 -> vector<16x128xf32>
    %301 = arith.select %5, %296, %300 : vector<16x128xi1>, vector<16x128xf32>
    %302 = arith.maximumf %299, %301 : vector<16x128xf32>
    %c1_i32_93 = arith.constant 1 : i32
    %303 = tpu.dynamic_rotate %302 by %c1_i32_93 dim 1 : vector<16x128xf32>, i32 -> vector<16x128xf32>
    %304 = arith.select %23, %302, %303 : vector<16x128xi1>, vector<16x128xf32>
    %305 = arith.maximumf %304, %302 : vector<16x128xf32>
    %c127_i32_94 = arith.constant 127 : i32
    %306 = tpu.dynamic_rotate %302 by %c127_i32_94 dim 1 : vector<16x128xf32>, i32 -> vector<16x128xf32>
    %307 = arith.select %41, %302, %306 : vector<16x128xi1>, vector<16x128xf32>
    %308 = arith.maximumf %305, %307 : vector<16x128xf32>
    %309 = arith.subf %263, %308 : vector<16x128xf32>
    %cst_95 = arith.constant 0.000000e+00 : f32
    %310 = vector.broadcast %cst_95 : f32 to vector<16x128xf32>
    %311 = arith.maximumf %309, %310 : vector<16x128xf32>
    %312 = arith.mulf %283, %311 : vector<16x128xf32>
    %313 = arith.subf %311, %312 : vector<16x128xf32>
    %cst_96 = arith.constant 0.000000e+00 : f32
    %314 = vector.broadcast %cst_96 : f32 to vector<16x128xf32>
    %315 = arith.maximumf %313, %314 : vector<16x128xf32>
    %316 = arith.addf %283, %315 : vector<16x128xf32>
    %c7_i32 = arith.constant 7 : i32
    %c1_i32_97 = arith.constant 1 : i32
    %317 = tpu.dynamic_rotate %296 by %c1_i32_97 dim 0 : vector<16x128xf32>, i32 -> vector<16x128xf32>
    %318 = arith.select %3, %296, %317 : vector<16x128xi1>, vector<16x128xf32>
    %319 = arith.minimumf %318, %296 : vector<16x128xf32>
    %c15_i32_98 = arith.constant 15 : i32
    %320 = tpu.dynamic_rotate %296 by %c15_i32_98 dim 0 : vector<16x128xf32>, i32 -> vector<16x128xf32>
    %321 = arith.select %5, %296, %320 : vector<16x128xi1>, vector<16x128xf32>
    %322 = arith.minimumf %319, %321 : vector<16x128xf32>
    %c1_i32_99 = arith.constant 1 : i32
    %323 = tpu.dynamic_rotate %296 by %c1_i32_99 dim 1 : vector<16x128xf32>, i32 -> vector<16x128xf32>
    %324 = arith.select %23, %296, %323 : vector<16x128xi1>, vector<16x128xf32>
    %325 = arith.minimumf %324, %296 : vector<16x128xf32>
    %c127_i32_100 = arith.constant 127 : i32
    %326 = tpu.dynamic_rotate %296 by %c127_i32_100 dim 1 : vector<16x128xf32>, i32 -> vector<16x128xf32>
    %327 = arith.select %41, %296, %326 : vector<16x128xi1>, vector<16x128xf32>
    %328 = arith.minimumf %325, %327 : vector<16x128xf32>
    %329 = arith.minimumf %322, %328 : vector<16x128xf32>
    %c1_i32_101 = arith.constant 1 : i32
    %330 = tpu.dynamic_rotate %329 by %c1_i32_101 dim 0 : vector<16x128xf32>, i32 -> vector<16x128xf32>
    %331 = arith.select %3, %329, %330 : vector<16x128xi1>, vector<16x128xf32>
    %332 = arith.maximumf %331, %329 : vector<16x128xf32>
    %c15_i32_102 = arith.constant 15 : i32
    %333 = tpu.dynamic_rotate %329 by %c15_i32_102 dim 0 : vector<16x128xf32>, i32 -> vector<16x128xf32>
    %334 = arith.select %5, %329, %333 : vector<16x128xi1>, vector<16x128xf32>
    %335 = arith.maximumf %332, %334 : vector<16x128xf32>
    %c1_i32_103 = arith.constant 1 : i32
    %336 = tpu.dynamic_rotate %335 by %c1_i32_103 dim 1 : vector<16x128xf32>, i32 -> vector<16x128xf32>
    %337 = arith.select %23, %335, %336 : vector<16x128xi1>, vector<16x128xf32>
    %338 = arith.maximumf %337, %335 : vector<16x128xf32>
    %c127_i32_104 = arith.constant 127 : i32
    %339 = tpu.dynamic_rotate %335 by %c127_i32_104 dim 1 : vector<16x128xf32>, i32 -> vector<16x128xf32>
    %340 = arith.select %41, %335, %339 : vector<16x128xi1>, vector<16x128xf32>
    %341 = arith.maximumf %338, %340 : vector<16x128xf32>
    %342 = arith.subf %296, %341 : vector<16x128xf32>
    %cst_105 = arith.constant 0.000000e+00 : f32
    %343 = vector.broadcast %cst_105 : f32 to vector<16x128xf32>
    %344 = arith.maximumf %342, %343 : vector<16x128xf32>
    %345 = arith.mulf %316, %344 : vector<16x128xf32>
    %346 = arith.subf %344, %345 : vector<16x128xf32>
    %cst_106 = arith.constant 0.000000e+00 : f32
    %347 = vector.broadcast %cst_106 : f32 to vector<16x128xf32>
    %348 = arith.maximumf %346, %347 : vector<16x128xf32>
    %349 = arith.addf %316, %348 : vector<16x128xf32>
    %c8_i32 = arith.constant 8 : i32
    %c1_i32_107 = arith.constant 1 : i32
    %350 = tpu.dynamic_rotate %329 by %c1_i32_107 dim 0 : vector<16x128xf32>, i32 -> vector<16x128xf32>
    %351 = arith.select %3, %329, %350 : vector<16x128xi1>, vector<16x128xf32>
    %352 = arith.minimumf %351, %329 : vector<16x128xf32>
    %c15_i32_108 = arith.constant 15 : i32
    %353 = tpu.dynamic_rotate %329 by %c15_i32_108 dim 0 : vector<16x128xf32>, i32 -> vector<16x128xf32>
    %354 = arith.select %5, %329, %353 : vector<16x128xi1>, vector<16x128xf32>
    %355 = arith.minimumf %352, %354 : vector<16x128xf32>
    %c1_i32_109 = arith.constant 1 : i32
    %356 = tpu.dynamic_rotate %329 by %c1_i32_109 dim 1 : vector<16x128xf32>, i32 -> vector<16x128xf32>
    %357 = arith.select %23, %329, %356 : vector<16x128xi1>, vector<16x128xf32>
    %358 = arith.minimumf %357, %329 : vector<16x128xf32>
    %c127_i32_110 = arith.constant 127 : i32
    %359 = tpu.dynamic_rotate %329 by %c127_i32_110 dim 1 : vector<16x128xf32>, i32 -> vector<16x128xf32>
    %360 = arith.select %41, %329, %359 : vector<16x128xi1>, vector<16x128xf32>
    %361 = arith.minimumf %358, %360 : vector<16x128xf32>
    %362 = arith.minimumf %355, %361 : vector<16x128xf32>
    %c1_i32_111 = arith.constant 1 : i32
    %363 = tpu.dynamic_rotate %362 by %c1_i32_111 dim 0 : vector<16x128xf32>, i32 -> vector<16x128xf32>
    %364 = arith.select %3, %362, %363 : vector<16x128xi1>, vector<16x128xf32>
    %365 = arith.maximumf %364, %362 : vector<16x128xf32>
    %c15_i32_112 = arith.constant 15 : i32
    %366 = tpu.dynamic_rotate %362 by %c15_i32_112 dim 0 : vector<16x128xf32>, i32 -> vector<16x128xf32>
    %367 = arith.select %5, %362, %366 : vector<16x128xi1>, vector<16x128xf32>
    %368 = arith.maximumf %365, %367 : vector<16x128xf32>
    %c1_i32_113 = arith.constant 1 : i32
    %369 = tpu.dynamic_rotate %368 by %c1_i32_113 dim 1 : vector<16x128xf32>, i32 -> vector<16x128xf32>
    %370 = arith.select %23, %368, %369 : vector<16x128xi1>, vector<16x128xf32>
    %371 = arith.maximumf %370, %368 : vector<16x128xf32>
    %c127_i32_114 = arith.constant 127 : i32
    %372 = tpu.dynamic_rotate %368 by %c127_i32_114 dim 1 : vector<16x128xf32>, i32 -> vector<16x128xf32>
    %373 = arith.select %41, %368, %372 : vector<16x128xi1>, vector<16x128xf32>
    %374 = arith.maximumf %371, %373 : vector<16x128xf32>
    %375 = arith.subf %329, %374 : vector<16x128xf32>
    %cst_115 = arith.constant 0.000000e+00 : f32
    %376 = vector.broadcast %cst_115 : f32 to vector<16x128xf32>
    %377 = arith.maximumf %375, %376 : vector<16x128xf32>
    %378 = arith.mulf %349, %377 : vector<16x128xf32>
    %379 = arith.subf %377, %378 : vector<16x128xf32>
    %cst_116 = arith.constant 0.000000e+00 : f32
    %380 = vector.broadcast %cst_116 : f32 to vector<16x128xf32>
    %381 = arith.maximumf %379, %380 : vector<16x128xf32>
    %382 = arith.addf %349, %381 : vector<16x128xf32>
    %c9_i32 = arith.constant 9 : i32
    %c1_i32_117 = arith.constant 1 : i32
    %383 = tpu.dynamic_rotate %362 by %c1_i32_117 dim 0 : vector<16x128xf32>, i32 -> vector<16x128xf32>
    %384 = arith.select %3, %362, %383 : vector<16x128xi1>, vector<16x128xf32>
    %385 = arith.minimumf %384, %362 : vector<16x128xf32>
    %c15_i32_118 = arith.constant 15 : i32
    %386 = tpu.dynamic_rotate %362 by %c15_i32_118 dim 0 : vector<16x128xf32>, i32 -> vector<16x128xf32>
    %387 = arith.select %5, %362, %386 : vector<16x128xi1>, vector<16x128xf32>
    %388 = arith.minimumf %385, %387 : vector<16x128xf32>
    %c1_i32_119 = arith.constant 1 : i32
    %389 = tpu.dynamic_rotate %362 by %c1_i32_119 dim 1 : vector<16x128xf32>, i32 -> vector<16x128xf32>
    %390 = arith.select %23, %362, %389 : vector<16x128xi1>, vector<16x128xf32>
    %391 = arith.minimumf %390, %362 : vector<16x128xf32>
    %c127_i32_120 = arith.constant 127 : i32
    %392 = tpu.dynamic_rotate %362 by %c127_i32_120 dim 1 : vector<16x128xf32>, i32 -> vector<16x128xf32>
    %393 = arith.select %41, %362, %392 : vector<16x128xi1>, vector<16x128xf32>
    %394 = arith.minimumf %391, %393 : vector<16x128xf32>
    %395 = arith.minimumf %388, %394 : vector<16x128xf32>
    %c1_i32_121 = arith.constant 1 : i32
    %396 = tpu.dynamic_rotate %395 by %c1_i32_121 dim 0 : vector<16x128xf32>, i32 -> vector<16x128xf32>
    %397 = arith.select %3, %395, %396 : vector<16x128xi1>, vector<16x128xf32>
    %398 = arith.maximumf %397, %395 : vector<16x128xf32>
    %c15_i32_122 = arith.constant 15 : i32
    %399 = tpu.dynamic_rotate %395 by %c15_i32_122 dim 0 : vector<16x128xf32>, i32 -> vector<16x128xf32>
    %400 = arith.select %5, %395, %399 : vector<16x128xi1>, vector<16x128xf32>
    %401 = arith.maximumf %398, %400 : vector<16x128xf32>
    %c1_i32_123 = arith.constant 1 : i32
    %402 = tpu.dynamic_rotate %401 by %c1_i32_123 dim 1 : vector<16x128xf32>, i32 -> vector<16x128xf32>
    %403 = arith.select %23, %401, %402 : vector<16x128xi1>, vector<16x128xf32>
    %404 = arith.maximumf %403, %401 : vector<16x128xf32>
    %c127_i32_124 = arith.constant 127 : i32
    %405 = tpu.dynamic_rotate %401 by %c127_i32_124 dim 1 : vector<16x128xf32>, i32 -> vector<16x128xf32>
    %406 = arith.select %41, %401, %405 : vector<16x128xi1>, vector<16x128xf32>
    %407 = arith.maximumf %404, %406 : vector<16x128xf32>
    %408 = arith.subf %362, %407 : vector<16x128xf32>
    %cst_125 = arith.constant 0.000000e+00 : f32
    %409 = vector.broadcast %cst_125 : f32 to vector<16x128xf32>
    %410 = arith.maximumf %408, %409 : vector<16x128xf32>
    %411 = arith.mulf %382, %410 : vector<16x128xf32>
    %412 = arith.subf %410, %411 : vector<16x128xf32>
    %cst_126 = arith.constant 0.000000e+00 : f32
    %413 = vector.broadcast %cst_126 : f32 to vector<16x128xf32>
    %414 = arith.maximumf %412, %413 : vector<16x128xf32>
    %415 = arith.addf %382, %414 : vector<16x128xf32>
    %416 = vector.extract_strided_slice %415 {offsets = [0, 0], sizes = [16, 64], strides = [1, 1]} : vector<16x128xf32> to vector<16x64xf32>
    %417 = vector.extract_strided_slice %415 {offsets = [0, 64], sizes = [16, 64], strides = [1, 1]} : vector<16x128xf32> to vector<16x64xf32>
    %418 = arith.index_cast %c0_i32_12 : i32 to index
    %c0_127 = arith.constant 0 : index
    %c0_128 = arith.constant 0 : index
    %419 = vector.load %arg1[%418, %c0_127, %c0_128] : memref<1x16x128xf32, #tpu.memory_space<vmem>>, vector<1x16x128xf32>
    %420 = vector.shape_cast %419 : vector<1x16x128xf32> to vector<16x128xf32>
    %421 = vector.extract_strided_slice %420 {offsets = [0, 0], sizes = [16, 64], strides = [1, 1]} : vector<16x128xf32> to vector<16x64xf32>
    %422 = vector.extract_strided_slice %420 {offsets = [0, 64], sizes = [16, 64], strides = [1, 1]} : vector<16x128xf32> to vector<16x64xf32>
    %423 = arith.mulf %417, %421 : vector<16x64xf32>
    %cst_129 = arith.constant dense<0.000000e+00> : vector<64xf32>
    %424 = vector.multi_reduction <add>, %423, %cst_129 [0] : vector<16x64xf32> to vector<64xf32>
    %425 = vector.shape_cast %424 : vector<64xf32> to vector<1x64xf32>
    %426 = arith.addf %42, %425 : vector<1x64xf32>
    %cst_130 = arith.constant dense<0.000000e+00> : vector<64xf32>
    %427 = vector.multi_reduction <add>, %417, %cst_130 [0] : vector<16x64xf32> to vector<64xf32>
    %428 = vector.shape_cast %427 : vector<64xf32> to vector<1x64xf32>
    %429 = arith.addf %42, %428 : vector<1x64xf32>
    %430 = arith.mulf %416, %422 : vector<16x64xf32>
    %cst_131 = arith.constant dense<0.000000e+00> : vector<64xf32>
    %431 = vector.multi_reduction <add>, %430, %cst_131 [0] : vector<16x64xf32> to vector<64xf32>
    %432 = vector.shape_cast %431 : vector<64xf32> to vector<1x64xf32>
    %433 = arith.addf %42, %432 : vector<1x64xf32>
    %cst_132 = arith.constant dense<0.000000e+00> : vector<64xf32>
    %434 = vector.multi_reduction <add>, %416, %cst_132 [0] : vector<16x64xf32> to vector<64xf32>
    %435 = vector.shape_cast %434 : vector<64xf32> to vector<1x64xf32>
    %436 = arith.addf %42, %435 : vector<1x64xf32>
    %c1_i32_133 = arith.constant 1 : i32
    %437 = tpu.concatenate %51, %54, %57, %426, %429, %433, %436, %42 in 0 : vector<1x64xf32>, vector<1x64xf32>, vector<1x64xf32>, vector<1x64xf32>, vector<1x64xf32>, vector<1x64xf32>, vector<1x64xf32>, vector<1x64xf32> -> vector<8x64xf32>
    %cst_134 = arith.constant 0.000000e+00 : f32
    %438 = vector.broadcast %cst_134 : f32 to vector<8x64xf32>
    %439 = tpu.concatenate %437, %438 in 1 : vector<8x64xf32>, vector<8x64xf32> -> vector<8x128xf32>
    %c0_135 = arith.constant 0 : index
    %c0_136 = arith.constant 0 : index
    %c0_137 = arith.constant 0 : index
    %440 = vector.load %arg2[%c0_135, %c0_136, %c0_137] : memref<1x8x128xf32, #tpu.memory_space<vmem>>, vector<1x8x128xf32>
    %441 = vector.shape_cast %440 : vector<1x8x128xf32> to vector<8x128xf32>
    %442 = vector.shape_cast %439 : vector<8x128xf32> to vector<1x8x128xf32>
    tpu.vector_store %arg2[%c0_135, %c0_136, %c0_137], %442 {strides = array<i32>} : memref<1x8x128xf32, #tpu.memory_space<vmem>>, vector<1x8x128xf32>,
    return
  }
  func.func @transform_0(%arg0: i32) -> (i32, i32, i32) {
    %c0_i32 = arith.constant 0 : i32
    %c0_i32_0 = arith.constant 0 : i32
    %c0_i32_1 = arith.constant 0 : i32
    return %arg0, %c0_i32, %c0_i32_0 : i32, i32, i32
  }
  func.func @transform_1(%arg0: i32) -> (i32, i32, i32) {
    %c0_i32 = arith.constant 0 : i32
    %c0_i32_0 = arith.constant 0 : i32
    %c0_i32_1 = arith.constant 0 : i32
    return %arg0, %c0_i32, %c0_i32_0 : i32, i32, i32
  }
}

</mosaic_0001>

<llo_original>
// kernel: soft_dice_cldice_loss.1
$region0: #{soft_dice_cldice_loss.1}
  #allocation0 [shape = 'u32[]', space=smem, size = 0x4, offset = 0x4, fixed_abs, tag = 'smem constant byte address 0x4 - core index']
  #allocation1 [shape = 'u32[72,128]{1,0:T(1,128)}', space=vmem, size = 0x9000, scoped, tag = 'internal scratch']
  %s0 = inlined_call_operand.vmem [shape: f32[2,16,128], index: 0, kind: input, shape index: {}]
  %s1 = inlined_call_operand.vmem [shape: f32[2,8,128], index: 1, kind: output, shape index: {}]
  %s2 = sld [smem:[#allocation0]]
  $region37: #{soft_dice_cldice_loss.1} parent=0
    _
  %s4 = ssub.s32 1, %s2
  %s5 = scalar_select 0, %s4, %s2
  loop: start=0, step=1, limit=4
  $region2: #{soft_dice_cldice_loss.1} parent=0 // loop_pre_header
    _
  $region3: #{soft_dice_cldice_loss.1} parent=0 // loop_header
    %s7 = sphi 0, %s11
    %p8 = scmp.ge.s32.totalorder %s7, 4
    %s17 = sphi 0, %s19
    %s20 = sphi 0, %s17
    %s21 = sphi 0, %s20
    %s37 = sphi 0, %s21
    %s43 = sphi 0, %s45
    %s46 = sphi 0, %s43
    %s47 = sphi 0, %s46
    %s63 = sphi 0, %s47
  $region4: #{soft_dice_cldice_loss.1} parent=0 // loop_header_branch
    %10 = sbr.rel (%p8) target = $region8
  $region5: #{soft_dice_cldice_loss.1} parent=0 // loop_body
    %s12 = ssub.s32 %s7, 1
    %s13 = ssub.s32 %s7, 2
    %s14 = sadd.s32 %s7, 1
    %s15 = ssub.s32 %s7, %s14
    %p16 = scmp.eq.s32.totalorder %s15, 0
    %s18 = sadd.s32 %s17, 1
    %s19 = scalar_select %p16, %s17, %s18
    %p22 = pneg %p16
    %p23 = scmp.eq.s32.totalorder %s7, 1
    %p24 = por %p22, %p23
    %p25 = scmp.ne.s32.totalorder %s17, %s20
    %p26 = scmp.eq.s32.totalorder %s7, 0
    %p27 = por %p25, %p26
    %p28 = scmp.ne.s32.totalorder %s17, %s20
    %p29 = scmp.eq.s32.totalorder %s12, 1
    %p30 = por %p28, %p29
    %p31 = scmp.ne.s32.totalorder %s20, %s21
    %p32 = scmp.eq.s32.totalorder %s12, 0
    %p33 = por %p31, %p32
    %p34 = scmp.ne.s32.totalorder %s20, %s21
    %p35 = scmp.eq.s32.totalorder %s13, 1
    %p36 = por %p34, %p35
    %p38 = scmp.ne.s32.totalorder %s21, %s37
    %p39 = scmp.eq.s32.totalorder %s13, 0
    %p40 = por %p38, %p39
    %s41 = ssub.s32 %s7, %s14
    %p42 = scmp.eq.s32.totalorder %s41, 0
    %s44 = sadd.s32 %s43, 1
    %s45 = scalar_select %p42, %s43, %s44
    %p48 = pneg %p42
    %p49 = scmp.eq.s32.totalorder %s7, 1
    %p50 = por %p48, %p49
    %p51 = scmp.ne.s32.totalorder %s43, %s46
    %p52 = scmp.eq.s32.totalorder %s7, 0
    %p53 = por %p51, %p52
    %p54 = scmp.ne.s32.totalorder %s43, %s46
    %p55 = scmp.eq.s32.totalorder %s12, 1
    %p56 = por %p54, %p55
    %p57 = scmp.ne.s32.totalorder %s46, %s47
    %p58 = scmp.eq.s32.totalorder %s12, 0
    %p59 = por %p57, %p58
    %p60 = scmp.ne.s32.totalorder %s46, %s47
    %p61 = scmp.eq.s32.totalorder %s13, 1
    %p62 = por %p60, %p61
    %p64 = scmp.ne.s32.totalorder %s47, %s63
    %p65 = scmp.eq.s32.totalorder %s13, 0
    %p66 = por %p64, %p65
    %p67 = scmp.le.s32.totalorder 1, %s7
    %p68 = scmp.lt.s32.totalorder %s7, 3
    %p69 = pnand %p67, %p68
    %p70 = pneg %p69
    // Predicated region
    $region9: #{soft_dice_cldice_loss.1} parent=5 // pred_check
      _
    $region10: #{soft_dice_cldice_loss.1} parent=5 // pred_check_branch
      %72 = sbr.rel (%p69) target = $region12
    $region11: #{soft_dice_cldice_loss.1} parent=5 // pred_region
      %s73 = ssub.s32 %s7, 1
    $region12: #{soft_dice_cldice_loss.1} parent=5 // pred_fallthru
      _
    %p74 = scmp.lt.s32.totalorder %s7, 2
    // Predicated region
    $region13: #{soft_dice_cldice_loss.1} parent=5 // pred_check
      %p75 = pneg %p74
    $region14: #{soft_dice_cldice_loss.1} parent=5 // pred_check_branch
      %77 = sbr.rel (%p75) target = $region16
    $region15: #{soft_dice_cldice_loss.1} parent=5 // pred_region
      // Predicated region
      $region17: #{soft_dice_cldice_loss.1} parent=15 // pred_check
        %p78 = pneg %p27
      $region18: #{soft_dice_cldice_loss.1} parent=15 // pred_check_branch
        %80 = sbr.rel (%p78) target = $region20
      $region19: #{soft_dice_cldice_loss.1} parent=15 // pred_region
        %p81 = scmp.lt.s32.totalorder %s7, 1
        %s82 = scalar_select %p81, %s7, 1
        %s83 = smul.addr %s82, 2
        %s84 = smul.addr %s83, 8
        %s85 = scalar_lea.vmem %s0, %s84
      $region20: #{soft_dice_cldice_loss.1} parent=15 // pred_fallthru
        _
    $region16: #{soft_dice_cldice_loss.1} parent=5 // pred_fallthru
      _
    %p86 = scmp.le.s32.totalorder 1, %s7
    %p87 = scmp.lt.s32.totalorder %s7, 3
    %p88 = pnand %p86, %p87
    %p89 = pneg %p88
    // Predicated region
    $region21: #{soft_dice_cldice_loss.1} parent=5 // pred_check
      _
    $region22: #{soft_dice_cldice_loss.1} parent=5 // pred_check_branch
      %91 = sbr.rel (%p88) target = $region24
    $region23: #{soft_dice_cldice_loss.1} parent=5 // pred_region
      %s92 = ssub.s32 %s7, 1
      %p93 = scmp.lt.s32.totalorder %s12, 1
      %s94 = scalar_select %p93, %s12, 1
      %s95 = smul.addr %s94, 2
      %s96 = smul.addr %s95, 8
      %s97 = scalar_lea.vmem %s0, %s96
      %p98 = pneg %p33
      %p99 = pneg %p30
      %p100 = pneg %p59
      %p101 = pneg %p56
      %p102 = scmp.lt.s32.totalorder %s12, 1
      %s103 = scalar_select %p102, %s12, 1
      %s104 = smul.addr %s103, 8
      %s105 = scalar_lea.vmem %s1, %s104
      %p106 = scmp.lt.s32.totalorder %s12, 1
      %s107 = scalar_select %p106, %s12, 1
      %s108 = smul.addr %s107, 2
      %s109 = smul.addr %s108, 8
      %s110 = scalar_lea.vmem %s0, %s109
      %p111 = scmp.lt.s32.totalorder %s12, 1
      %s112 = scalar_select %p111, %s12, 1
      %s113 = smul.addr %s112, 8
      %s114 = scalar_lea.vmem %s1, %s113
      %v115 = vlaneseq
      %v116 = vshrl.u32 %v115, 7
      %v117 = vadd.s32 %v116, 8
      %v118 = vlaneseq
      %v119 = vand.u32 %v118, 127
      %vm120 = vcmp.eq.s32.totalorder %v116, 0
      %vm121 = vcmp.eq.s32.totalorder %v117, 0
      %vm122 = vcmp.eq.s32.totalorder %v116, 15
      %vm123 = vcmp.eq.s32.totalorder %v117, 15
      %vm124 = vcmp.lt.s32.totalorder %v119, 0
      %v125 = vsub.s32 0, %v119
      %v126 = vsel %vm124, %v125, %v119
      %v127 = vshrl.u32 %v126, 4
      %v128 = vand.u32 %v126, 15
      %v129 = vsub.s32 0, %v128
      %v130 = vsel %vm124, %v129, %v128
      %vm131 = vcmp.ne.s32.totalorder %v130, 0
      %vm132 = vcmp.lt.s32.totalorder %v130, 0
      %vm133 = vmand %vm132, %vm131
      %v134 = vadd.s32 %v130, 16
      %v135 = vsel %vm133, %v134, %v130
      %vm136 = vcmp.eq.s32.totalorder %v135, 0
      %vm137 = vcmp.eq.s32.totalorder %v135, 15
      %v138 = vld [vmem:[%s110] sm:$0xff]
      %v139 = vld [vmem:[%s110 + $0x8] sm:$0xff]
      %142 = vrot.lane.b32.xlu0 %v138, 64
      %v143 = vpop.permute.xlu0 %142
      %144 = vrot.lane.b32.xlu0 %v139, 64
      %v145 = vpop.permute.xlu0 %144
      %v148 = vmul.f32 %v138, %v143
      %v149 = vmul.f32 %v139, %v145
      %vm150 = vcmask 523264
      %v151 = vsel %vm150, %v148, 0.0
      %v152 = vsel %vm150, %v149, 0.0
      %v153 = vadd.f32 %v151, %v152
      %v154 = vrot.slane %v153, 4
      %v155 = vadd.f32 %v153, %v154
      %v156 = vrot.slane %v155, 2
      %v157 = vadd.f32 %v155, %v156
      %v158 = vrot.slane %v157, 1
      %v159 = vadd.f32 %v157, %v158
      %v160 = vadd.f32 %v159, 0.0
      %v161 = vsel %vm150, %v138, 0.0
      %v162 = vsel %vm150, %v139, 0.0
      %v163 = vadd.f32 %v161, %v162
      %v164 = vrot.slane %v163, 4
      %v165 = vadd.f32 %v163, %v164
      %v166 = vrot.slane %v165, 2
      %v167 = vadd.f32 %v165, %v166
      %v168 = vrot.slane %v167, 1
      %v169 = vadd.f32 %v167, %v168
      %v170 = vadd.f32 %v169, 0.0
      %vm171 = vcmask 1048064
      %v172 = vsel %vm171, %v138, 0.0
      %v173 = vsel %vm171, %v139, 0.0
      %v174 = vadd.f32 %v172, %v173
      %v175 = vrot.slane %v174, 4
      %v176 = vadd.f32 %v174, %v175
      %v177 = vrot.slane %v176, 2
      %v178 = vadd.f32 %v176, %v177
      %v179 = vrot.slane %v178, 1
      %v180 = vadd.f32 %v178, %v179
      %v181 = vadd.f32 %v180, 0.0
      %v182 = vrot.slane %v138, 7
      %v183 = vrot.slane %v139, 7
      %vm184 = vcmp.lt.s32.totalorder %v116, 1
      %v185 = vsel %vm184, %v182, %v183
      %v186 = vsel %vm184, %v183, %v182
      %v187 = vsel %vm120, %v138, %v186
      %v188 = vsel %vm121, %v139, %v185
      %v189 = vmin.f32 %v187, %v138
      %v190 = vmin.f32 %v188, %v139
      %v191 = vrot.slane %v138, 1
      %v192 = vrot.slane %v139, 1
      %vm193 = vcmp.lt.s32.totalorder %v116, 7
      %v194 = vsel %vm193, %v191, %v192
      %v195 = vsel %vm193, %v192, %v191
      %v196 = vsel %vm122, %v138, %v194
      %v197 = vsel %vm123, %v139, %v195
      %v198 = vmin.f32 %v189, %v196
      %v199 = vmin.f32 %v190, %v197
      %200 = vrot.lane.b32.xlu0 %v138, 1
      %v201 = vpop.permute.xlu0 %200
      %202 = vrot.lane.b32.xlu0 %v139, 1
      %v203 = vpop.permute.xlu0 %202
      %v204 = vsel %vm136, %v138, %v201
      %v205 = vsel %vm136, %v139, %v203
      %v206 = vmin.f32 %v204, %v138
      %v207 = vmin.f32 %v205, %v139
      %208 = vrot.lane.b32.xlu0 %v138, 127
      %v209 = vpop.permute.xlu0 %208
      %210 = vrot.lane.b32.xlu0 %v139, 127
      %v211 = vpop.permute.xlu0 %210
      %v212 = vsel %vm137, %v138, %v209
      %v213 = vsel %vm137, %v139, %v211
      %v214 = vmin.f32 %v206, %v212
      %v215 = vmin.f32 %v207, %v213
      %v216 = vmin.f32 %v198, %v214
      %v217 = vmin.f32 %v199, %v215
      %v218 = vrot.slane %v216, 7
      %v219 = vrot.slane %v217, 7
      %v220 = vsel %vm184, %v218, %v219
      %v221 = vsel %vm184, %v219, %v218
      %v222 = vsel %vm120, %v216, %v221
      %v223 = vsel %vm121, %v217, %v220
      %v224 = vmax.f32 %v222, %v216
      %v225 = vmax.f32 %v223, %v217
      %v226 = vrot.slane %v216, 1
      %v227 = vrot.slane %v217, 1
      %v228 = vsel %vm193, %v226, %v227
      %v229 = vsel %vm193, %v227, %v226
      %v230 = vsel %vm122, %v216, %v228
      %v231 = vsel %vm123, %v217, %v229
      %v232 = vmax.f32 %v224, %v230
      %v233 = vmax.f32 %v225, %v231
      %234 = vrot.lane.b32.xlu0 %v232, 1
      %v235 = vpop.permute.xlu0 %234
      %236 = vrot.lane.b32.xlu0 %v233, 1
      %v237 = vpop.permute.xlu0 %236
      %v238 = vsel %vm136, %v232, %v235
      %v239 = vsel %vm136, %v233, %v237
      %v240 = vmax.f32 %v238, %v232
      %v241 = vmax.f32 %v239, %v233
      %242 = vrot.lane.b32.xlu0 %v232, 127
      %v243 = vpop.permute.xlu0 %242
      %244 = vrot.lane.b32.xlu0 %v233, 127
      %v245 = vpop.permute.xlu0 %244
      %v246 = vsel %vm137, %v232, %v243
      %v247 = vsel %vm137, %v233, %v245
      %v248 = vmax.f32 %v240, %v246
      %v249 = vmax.f32 %v241, %v247
      %v250 = vsub.f32 %v138, %v248
      %v251 = vsub.f32 %v139, %v249
      %v252 = vmax.f32 %v250, 0.0
      %v253 = vmax.f32 %v251, 0.0
      %v254 = vmin.f32 %v222, %v216
      %v255 = vmin.f32 %v223, %v217
      %v256 = vmin.f32 %v254, %v230
      %v257 = vmin.f32 %v255, %v231
      %258 = vrot.lane.b32.xlu0 %v216, 1
      %v259 = vpop.permute.xlu0 %258
      %260 = vrot.lane.b32.xlu0 %v217, 1
      %v261 = vpop.permute.xlu0 %260
      %v262 = vsel %vm136, %v216, %v259
      %v263 = vsel %vm136, %v217, %v261
      %v264 = vmin.f32 %v262, %v216
      %v265 = vmin.f32 %v263, %v217
      %266 = vrot.lane.b32.xlu0 %v216, 127
      %v267 = vpop.permute.xlu0 %266
      %268 = vrot.lane.b32.xlu0 %v217, 127
      %v269 = vpop.permute.xlu0 %268
      %v270 = vsel %vm137, %v216, %v267
      %v271 = vsel %vm137, %v217, %v269
      %v272 = vmin.f32 %v264, %v270
      %v273 = vmin.f32 %v265, %v271
      %v274 = vmin.f32 %v256, %v272
      %v275 = vmin.f32 %v257, %v273
      %v276 = vrot.slane %v274, 7
      %v277 = vrot.slane %v275, 7
      %v278 = vsel %vm184, %v276, %v277
      %v279 = vsel %vm184, %v277, %v276
      %v280 = vsel %vm120, %v274, %v279
      %v281 = vsel %vm121, %v275, %v278
      %v282 = vmax.f32 %v280, %v274
      %v283 = vmax.f32 %v281, %v275
      %v284 = vrot.slane %v274, 1
      %v285 = vrot.slane %v275, 1
      %v286 = vsel %vm193, %v284, %v285
      %v287 = vsel %vm193, %v285, %v284
      %v288 = vsel %vm122, %v274, %v286
      %v289 = vsel %vm123, %v275, %v287
      %v290 = vmax.f32 %v282, %v288
      %v291 = vmax.f32 %v283, %v289
      %292 = vrot.lane.b32.xlu0 %v290, 1
      %v293 = vpop.permute.xlu0 %292
      %294 = vrot.lane.b32.xlu0 %v291, 1
      %v295 = vpop.permute.xlu0 %294
      %v296 = vsel %vm136, %v290, %v293
      %v297 = vsel %vm136, %v291, %v295
      %v298 = vmax.f32 %v296, %v290
      %v299 = vmax.f32 %v297, %v291
      %300 = vrot.lane.b32.xlu0 %v290, 127
      %v301 = vpop.permute.xlu0 %300
      %302 = vrot.lane.b32.xlu0 %v291, 127
      %v303 = vpop.permute.xlu0 %302
      %v304 = vsel %vm137, %v290, %v301
      %v305 = vsel %vm137, %v291, %v303
      %v306 = vmax.f32 %v298, %v304
      %v307 = vmax.f32 %v299, %v305
      %v308 = vsub.f32 %v216, %v306
      %v309 = vsub.f32 %v217, %v307
      %v310 = vmax.f32 %v308, 0.0
      %v311 = vmax.f32 %v309, 0.0
      %v312 = vmul.f32 %v252, %v310
      %v313 = vmul.f32 %v253, %v311
      %v314 = vsub.f32 %v310, %v312
      %v315 = vsub.f32 %v311, %v313
      %v316 = vmax.f32 %v314, 0.0
      %v317 = vmax.f32 %v315, 0.0
      %v318 = vadd.f32 %v252, %v316
      %v319 = vadd.f32 %v253, %v317
      %v320 = vmin.f32 %v280, %v274
      %v321 = vmin.f32 %v281, %v275
      %v322 = vmin.f32 %v320, %v288
      %v323 = vmin.f32 %v321, %v289
      %324 = vrot.lane.b32.xlu0 %v274, 1
      %v325 = vpop.permute.xlu0 %324
      %326 = vrot.lane.b32.xlu0 %v275, 1
      %v327 = vpop.permute.xlu0 %326
      %v328 = vsel %vm136, %v274, %v325
      %v329 = vsel %vm136, %v275, %v327
      %v330 = vmin.f32 %v328, %v274
      %v331 = vmin.f32 %v329, %v275
      %332 = vrot.lane.b32.xlu0 %v274, 127
      %v333 = vpop.permute.xlu0 %332
      %334 = vrot.lane.b32.xlu0 %v275, 127
      %v335 = vpop.permute.xlu0 %334
      %v336 = vsel %vm137, %v274, %v333
      %v337 = vsel %vm137, %v275, %v335
      %v338 = vmin.f32 %v330, %v336
      %v339 = vmin.f32 %v331, %v337
      %v340 = vmin.f32 %v322, %v338
      %v341 = vmin.f32 %v323, %v339
      %v342 = vrot.slane %v340, 7
      %v343 = vrot.slane %v341, 7
      %v344 = vsel %vm184, %v342, %v343
      %v345 = vsel %vm184, %v343, %v342
      %v346 = vsel %vm120, %v340, %v345
      %v347 = vsel %vm121, %v341, %v344
      %v348 = vmax.f32 %v346, %v340
      %v349 = vmax.f32 %v347, %v341
      %v350 = vrot.slane %v340, 1
      %v351 = vrot.slane %v341, 1
      %v352 = vsel %vm193, %v350, %v351
      %v353 = vsel %vm193, %v351, %v350
      %v354 = vsel %vm122, %v340, %v352
      %v355 = vsel %vm123, %v341, %v353
      %v356 = vmax.f32 %v348, %v354
      %v357 = vmax.f32 %v349, %v355
      %358 = vrot.lane.b32.xlu0 %v356, 1
      %v359 = vpop.permute.xlu0 %358
      %360 = vrot.lane.b32.xlu0 %v357, 1
      %v361 = vpop.permute.xlu0 %360
      %v362 = vsel %vm136, %v356, %v359
      %v363 = vsel %vm136, %v357, %v361
      %v364 = vmax.f32 %v362, %v356
      %v365 = vmax.f32 %v363, %v357
      %366 = vrot.lane.b32.xlu0 %v356, 127
      %v367 = vpop.permute.xlu0 %366
      %368 = vrot.lane.b32.xlu0 %v357, 127
      %v369 = vpop.permute.xlu0 %368
      %v370 = vsel %vm137, %v356, %v367
      %v371 = vsel %vm137, %v357, %v369
      %v372 = vmax.f32 %v364, %v370
      %v373 = vmax.f32 %v365, %v371
      %v374 = vsub.f32 %v274, %v372
      %v375 = vsub.f32 %v275, %v373
      %v376 = vmax.f32 %v374, 0.0
      %v377 = vmax.f32 %v375, 0.0
      %v378 = vmul.f32 %v318, %v376
      %v379 = vmul.f32 %v319, %v377
      %v380 = vsub.f32 %v376, %v378
      %v381 = vsub.f32 %v377, %v379
      %v382 = vmax.f32 %v380, 0.0
      %v383 = vmax.f32 %v381, 0.0
      %v384 = vadd.f32 %v318, %v382
      %v385 = vadd.f32 %v319, %v383
      %v386 = vmin.f32 %v346, %v340
      %v387 = vmin.f32 %v347, %v341
      %v388 = vmin.f32 %v386, %v354
      %v389 = vmin.f32 %v387, %v355
      %390 = vrot.lane.b32.xlu0 %v340, 1
      %v391 = vpop.permute.xlu0 %390
      %392 = vrot.lane.b32.xlu0 %v341, 1
      %v393 = vpop.permute.xlu0 %392
      %v394 = vsel %vm136, %v340, %v391
      %v395 = vsel %vm136, %v341, %v393
      %v396 = vmin.f32 %v394, %v340
      %v397 = vmin.f32 %v395, %v341
      %398 = vrot.lane.b32.xlu0 %v340, 127
      %v399 = vpop.permute.xlu0 %398
      %400 = vrot.lane.b32.xlu0 %v341, 127
      %v401 = vpop.permute.xlu0 %400
      %v402 = vsel %vm137, %v340, %v399
      %v403 = vsel %vm137, %v341, %v401
      %v404 = vmin.f32 %v396, %v402
      %v405 = vmin.f32 %v397, %v403
      %v406 = vmin.f32 %v388, %v404
      %v407 = vmin.f32 %v389, %v405
      %v408 = vrot.slane %v406, 7
      %v409 = vrot.slane %v407, 7
      %v410 = vsel %vm184, %v408, %v409
      %v411 = vsel %vm184, %v409, %v408
      %v412 = vsel %vm120, %v406, %v411
      %v413 = vsel %vm121, %v407, %v410
      %v414 = vmax.f32 %v412, %v406
      %v415 = vmax.f32 %v413, %v407
      %v416 = vrot.slane %v406, 1
      %v417 = vrot.slane %v407, 1
      %v418 = vsel %vm193, %v416, %v417
      %v419 = vsel %vm193, %v417, %v416
      %v420 = vsel %vm122, %v406, %v418
      %v421 = vsel %vm123, %v407, %v419
      %v422 = vmax.f32 %v414, %v420
      %v423 = vmax.f32 %v415, %v421
      %424 = vrot.lane.b32.xlu0 %v422, 1
      %v425 = vpop.permute.xlu0 %424
      %426 = vrot.lane.b32.xlu0 %v423, 1
      %v427 = vpop.permute.xlu0 %426
      %v428 = vsel %vm136, %v422, %v425
      %v429 = vsel %vm136, %v423, %v427
      %v430 = vmax.f32 %v428, %v422
      %v431 = vmax.f32 %v429, %v423
      %432 = vrot.lane.b32.xlu0 %v422, 127
      %v433 = vpop.permute.xlu0 %432
      %434 = vrot.lane.b32.xlu0 %v423, 127
      %v435 = vpop.permute.xlu0 %434
      %v436 = vsel %vm137, %v422, %v433
      %v437 = vsel %vm137, %v423, %v435
      %v438 = vmax.f32 %v430, %v436
      %v439 = vmax.f32 %v431, %v437
      %v440 = vsub.f32 %v340, %v438
      %v441 = vsub.f32 %v341, %v439
      %v442 = vmax.f32 %v440, 0.0
      %v443 = vmax.f32 %v441, 0.0
      %v444 = vmul.f32 %v384, %v442
      %v445 = vmul.f32 %v385, %v443
      %v446 = vsub.f32 %v442, %v444
      %v447 = vsub.f32 %v443, %v445
      %v448 = vmax.f32 %v446, 0.0
      %v449 = vmax.f32 %v447, 0.0
      %v450 = vadd.f32 %v384, %v448
      %v451 = vadd.f32 %v385, %v449
      %v452 = vmin.f32 %v412, %v406
      %v453 = vmin.f32 %v413, %v407
      %v454 = vmin.f32 %v452, %v420
      %v455 = vmin.f32 %v453, %v421
      %456 = vrot.lane.b32.xlu0 %v406, 1
      %v457 = vpop.permute.xlu0 %456
      %458 = vrot.lane.b32.xlu0 %v407, 1
      %v459 = vpop.permute.xlu0 %458
      %v460 = vsel %vm136, %v406, %v457
      %v461 = vsel %vm136, %v407, %v459
      %v462 = vmin.f32 %v460, %v406
      %v463 = vmin.f32 %v461, %v407
      %464 = vrot.lane.b32.xlu0 %v406, 127
      %v465 = vpop.permute.xlu0 %464
      %466 = vrot.lane.b32.xlu0 %v407, 127
      %v467 = vpop.permute.xlu0 %466
      %v468 = vsel %vm137, %v406, %v465
      %v469 = vsel %vm137, %v407, %v467
      %v470 = vmin.f32 %v462, %v468
      %v471 = vmin.f32 %v463, %v469
      %v472 = vmin.f32 %v454, %v470
      %v473 = vmin.f32 %v455, %v471
      %v474 = vrot.slane %v472, 7
      %v475 = vrot.slane %v473, 7
      %v476 = vsel %vm184, %v474, %v475
      %v477 = vsel %vm184, %v475, %v474
      %v478 = vsel %vm120, %v472, %v477
      %v479 = vsel %vm121, %v473, %v476
      %v480 = vmax.f32 %v478, %v472
      %v481 = vmax.f32 %v479, %v473
      %v482 = vrot.slane %v472, 1
      %v483 = vrot.slane %v473, 1
      %v484 = vsel %vm193, %v482, %v483
      %v485 = vsel %vm193, %v483, %v482
      %v486 = vsel %vm122, %v472, %v484
      %v487 = vsel %vm123, %v473, %v485
      %v488 = vmax.f32 %v480, %v486
      %v489 = vmax.f32 %v481, %v487
      %490 = vrot.lane.b32.xlu0 %v488, 1
      %v491 = vpop.permute.xlu0 %490
      %492 = vrot.lane.b32.xlu0 %v489, 1
      %v493 = vpop.permute.xlu0 %492
      %v494 = vsel %vm136, %v488, %v491
      %v495 = vsel %vm136, %v489, %v493
      %v496 = vmax.f32 %v494, %v488
      %v497 = vmax.f32 %v495, %v489
      %498 = vrot.lane.b32.xlu0 %v488, 127
      %v499 = vpop.permute.xlu0 %498
      %500 = vrot.lane.b32.xlu0 %v489, 127
      %v501 = vpop.permute.xlu0 %500
      %v502 = vsel %vm137, %v488, %v499
      %v503 = vsel %vm137, %v489, %v501
      %v504 = vmax.f32 %v496, %v502
      %v505 = vmax.f32 %v497, %v503
      %v506 = vsub.f32 %v406, %v504
      %v507 = vsub.f32 %v407, %v505
      %v508 = vmax.f32 %v506, 0.0
      %v509 = vmax.f32 %v507, 0.0
      %v510 = vmul.f32 %v450, %v508
      %v511 = vmul.f32 %v451, %v509
      %v512 = vsub.f32 %v508, %v510
      %v513 = vsub.f32 %v509, %v511
      %v514 = vmax.f32 %v512, 0.0
      %v515 = vmax.f32 %v513, 0.0
      %v516 = vadd.f32 %v450, %v514
      %v517 = vadd.f32 %v451, %v515
      %v518 = vmin.f32 %v478, %v472
      %v519 = vmin.f32 %v479, %v473
      %v520 = vmin.f32 %v518, %v486
      %v521 = vmin.f32 %v519, %v487
      %522 = vrot.lane.b32.xlu0 %v472, 1
      %v523 = vpop.permute.xlu0 %522
      %524 = vrot.lane.b32.xlu0 %v473, 1
      %v525 = vpop.permute.xlu0 %524
      %v526 = vsel %vm136, %v472, %v523
      %v527 = vsel %vm136, %v473, %v525
      %v528 = vmin.f32 %v526, %v472
      %v529 = vmin.f32 %v527, %v473
      %530 = vrot.lane.b32.xlu0 %v472, 127
      %v531 = vpop.permute.xlu0 %530
      %532 = vrot.lane.b32.xlu0 %v473, 127
      %v533 = vpop.permute.xlu0 %532
      %v534 = vsel %vm137, %v472, %v531
      %v535 = vsel %vm137, %v473, %v533
      %v536 = vmin.f32 %v528, %v534
      %v537 = vmin.f32 %v529, %v535
      %v538 = vmin.f32 %v520, %v536
      %v539 = vmin.f32 %v521, %v537
      %v540 = vrot.slane %v538, 7
      %v541 = vrot.slane %v539, 7
      %v542 = vsel %vm184, %v540, %v541
      %v543 = vsel %vm184, %v541, %v540
      %v544 = vsel %vm120, %v538, %v543
      %v545 = vsel %vm121, %v539, %v542
      %v546 = vmax.f32 %v544, %v538
      %v547 = vmax.f32 %v545, %v539
      %v548 = vrot.slane %v538, 1
      %v549 = vrot.slane %v539, 1
      %v550 = vsel %vm193, %v548, %v549
      %v551 = vsel %vm193, %v549, %v548
      %v552 = vsel %vm122, %v538, %v550
      %v553 = vsel %vm123, %v539, %v551
      %v554 = vmax.f32 %v546, %v552
      %v555 = vmax.f32 %v547, %v553
      %556 = vrot.lane.b32.xlu0 %v554, 1
      %v557 = vpop.permute.xlu0 %556
      %558 = vrot.lane.b32.xlu0 %v555, 1
      %v559 = vpop.permute.xlu0 %558
      %v560 = vsel %vm136, %v554, %v557
      %v561 = vsel %vm136, %v555, %v559
      %v562 = vmax.f32 %v560, %v554
      %v563 = vmax.f32 %v561, %v555
      %564 = vrot.lane.b32.xlu0 %v554, 127
      %v565 = vpop.permute.xlu0 %564
      %566 = vrot.lane.b32.xlu0 %v555, 127
      %v567 = vpop.permute.xlu0 %566
      %v568 = vsel %vm137, %v554, %v565
      %v569 = vsel %vm137, %v555, %v567
      %v570 = vmax.f32 %v562, %v568
      %v571 = vmax.f32 %v563, %v569
      %v572 = vsub.f32 %v472, %v570
      %v573 = vsub.f32 %v473, %v571
      %v574 = vmax.f32 %v572, 0.0
      %v575 = vmax.f32 %v573, 0.0
      %v576 = vmul.f32 %v516, %v574
      %v577 = vmul.f32 %v517, %v575
      %v578 = vsub.f32 %v574, %v576
      %v579 = vsub.f32 %v575, %v577
      %v580 = vmax.f32 %v578, 0.0
      %v581 = vmax.f32 %v579, 0.0
      %v582 = vadd.f32 %v516, %v580
      %v583 = vadd.f32 %v517, %v581
      %v584 = vmin.f32 %v544, %v538
      %v585 = vmin.f32 %v545, %v539
      %v586 = vmin.f32 %v584, %v552
      %v587 = vmin.f32 %v585, %v553
      %588 = vrot.lane.b32.xlu0 %v538, 1
      %v589 = vpop.permute.xlu0 %588
      %590 = vrot.lane.b32.xlu0 %v539, 1
      %v591 = vpop.permute.xlu0 %590
      %v592 = vsel %vm136, %v538, %v589
      %v593 = vsel %vm136, %v539, %v591
      %v594 = vmin.f32 %v592, %v538
      %v595 = vmin.f32 %v593, %v539
      %596 = vrot.lane.b32.xlu0 %v538, 127
      %v597 = vpop.permute.xlu0 %596
      %598 = vrot.lane.b32.xlu0 %v539, 127
      %v599 = vpop.permute.xlu0 %598
      %v600 = vsel %vm137, %v538, %v597
      %v601 = vsel %vm137, %v539, %v599
      %v602 = vmin.f32 %v594, %v600
      %v603 = vmin.f32 %v595, %v601
      %v604 = vmin.f32 %v586, %v602
      %v605 = vmin.f32 %v587, %v603
      %v606 = vrot.slane %v604, 7
      %v607 = vrot.slane %v605, 7
      %v608 = vsel %vm184, %v606, %v607
      %v609 = vsel %vm184, %v607, %v606
      %v610 = vsel %vm120, %v604, %v609
      %v611 = vsel %vm121, %v605, %v608
      %v612 = vmax.f32 %v610, %v604
      %v613 = vmax.f32 %v611, %v605
      %v614 = vrot.slane %v604, 1
      %v615 = vrot.slane %v605, 1
      %v616 = vsel %vm193, %v614, %v615
      %v617 = vsel %vm193, %v615, %v614
      %v618 = vsel %vm122, %v604, %v616
      %v619 = vsel %vm123, %v605, %v617
      %v620 = vmax.f32 %v612, %v618
      %v621 = vmax.f32 %v613, %v619
      %622 = vrot.lane.b32.xlu0 %v620, 1
      %v623 = vpop.permute.xlu0 %622
      %624 = vrot.lane.b32.xlu0 %v621, 1
      %v625 = vpop.permute.xlu0 %624
      %v626 = vsel %vm136, %v620, %v623
      %v627 = vsel %vm136, %v621, %v625
      %v628 = vmax.f32 %v626, %v620
      %v629 = vmax.f32 %v627, %v621
      %630 = vrot.lane.b32.xlu0 %v620, 127
      %v631 = vpop.permute.xlu0 %630
      %632 = vrot.lane.b32.xlu0 %v621, 127
      %v633 = vpop.permute.xlu0 %632
      %v634 = vsel %vm137, %v620, %v631
      %v635 = vsel %vm137, %v621, %v633
      %v636 = vmax.f32 %v628, %v634
      %v637 = vmax.f32 %v629, %v635
      %v638 = vsub.f32 %v538, %v636
      %v639 = vsub.f32 %v539, %v637
      %v640 = vmax.f32 %v638, 0.0
      %v641 = vmax.f32 %v639, 0.0
      %v642 = vmul.f32 %v582, %v640
      %v643 = vmul.f32 %v583, %v641
      %v644 = vsub.f32 %v640, %v642
      %v645 = vsub.f32 %v641, %v643
      %v646 = vmax.f32 %v644, 0.0
      %v647 = vmax.f32 %v645, 0.0
      %v648 = vadd.f32 %v582, %v646
      %v649 = vadd.f32 %v583, %v647
      %v650 = vmin.f32 %v610, %v604
      %v651 = vmin.f32 %v611, %v605
      %v652 = vmin.f32 %v650, %v618
      %v653 = vmin.f32 %v651, %v619
      %654 = vrot.lane.b32.xlu0 %v604, 1
      %v655 = vpop.permute.xlu0 %654
      %656 = vrot.lane.b32.xlu0 %v605, 1
      %v657 = vpop.permute.xlu0 %656
      %v658 = vsel %vm136, %v604, %v655
      %v659 = vsel %vm136, %v605, %v657
      %v660 = vmin.f32 %v658, %v604
      %v661 = vmin.f32 %v659, %v605
      %662 = vrot.lane.b32.xlu0 %v604, 127
      %v663 = vpop.permute.xlu0 %662
      %664 = vrot.lane.b32.xlu0 %v605, 127
      %v665 = vpop.permute.xlu0 %664
      %v666 = vsel %vm137, %v604, %v663
      %v667 = vsel %vm137, %v605, %v665
      %v668 = vmin.f32 %v660, %v666
      %v669 = vmin.f32 %v661, %v667
      %v670 = vmin.f32 %v652, %v668
      %v671 = vmin.f32 %v653, %v669
      %v672 = vrot.slane %v670, 7
      %v673 = vrot.slane %v671, 7
      %v674 = vsel %vm184, %v672, %v673
      %v675 = vsel %vm184, %v673, %v672
      %v676 = vsel %vm120, %v670, %v675
      %v677 = vsel %vm121, %v671, %v674
      %v678 = vmax.f32 %v676, %v670
      %v679 = vmax.f32 %v677, %v671
      %v680 = vrot.slane %v670, 1
      %v681 = vrot.slane %v671, 1
      %v682 = vsel %vm193, %v680, %v681
      %v683 = vsel %vm193, %v681, %v680
      %v684 = vsel %vm122, %v670, %v682
      %v685 = vsel %vm123, %v671, %v683
      %v686 = vmax.f32 %v678, %v684
      %v687 = vmax.f32 %v679, %v685
      %688 = vrot.lane.b32.xlu0 %v686, 1
      %v689 = vpop.permute.xlu0 %688
      %690 = vrot.lane.b32.xlu0 %v687, 1
      %v691 = vpop.permute.xlu0 %690
      %v692 = vsel %vm136, %v686, %v689
      %v693 = vsel %vm136, %v687, %v691
      %v694 = vmax.f32 %v692, %v686
      %v695 = vmax.f32 %v693, %v687
      %696 = vrot.lane.b32.xlu0 %v686, 127
      %v697 = vpop.permute.xlu0 %696
      %698 = vrot.lane.b32.xlu0 %v687, 127
      %v699 = vpop.permute.xlu0 %698
      %v700 = vsel %vm137, %v686, %v697
      %v701 = vsel %vm137, %v687, %v699
      %v702 = vmax.f32 %v694, %v700
      %v703 = vmax.f32 %v695, %v701
      %v704 = vsub.f32 %v604, %v702
      %v705 = vsub.f32 %v605, %v703
      %v706 = vmax.f32 %v704, 0.0
      %v707 = vmax.f32 %v705, 0.0
      %v708 = vmul.f32 %v648, %v706
      %v709 = vmul.f32 %v649, %v707
      %v710 = vsub.f32 %v706, %v708
      %v711 = vsub.f32 %v707, %v709
      %v712 = vmax.f32 %v710, 0.0
      %v713 = vmax.f32 %v711, 0.0
      %v714 = vadd.f32 %v648, %v712
      %v715 = vadd.f32 %v649, %v713
      %v716 = vmin.f32 %v676, %v670
      %v717 = vmin.f32 %v677, %v671
      %v718 = vmin.f32 %v716, %v684
      %v719 = vmin.f32 %v717, %v685
      %720 = vrot.lane.b32.xlu0 %v670, 1
      %v721 = vpop.permute.xlu0 %720
      %722 = vrot.lane.b32.xlu0 %v671, 1
      %v723 = vpop.permute.xlu0 %722
      %v724 = vsel %vm136, %v670, %v721
      %v725 = vsel %vm136, %v671, %v723
      %v726 = vmin.f32 %v724, %v670
      %v727 = vmin.f32 %v725, %v671
      %728 = vrot.lane.b32.xlu0 %v670, 127
      %v729 = vpop.permute.xlu0 %728
      %730 = vrot.lane.b32.xlu0 %v671, 127
      %v731 = vpop.permute.xlu0 %730
      %v732 = vsel %vm137, %v670, %v729
      %v733 = vsel %vm137, %v671, %v731
      %v734 = vmin.f32 %v726, %v732
      %v735 = vmin.f32 %v727, %v733
      %v736 = vmin.f32 %v718, %v734
      %v737 = vmin.f32 %v719, %v735
      %v738 = vrot.slane %v736, 7
      %v739 = vrot.slane %v737, 7
      %v740 = vsel %vm184, %v738, %v739
      %v741 = vsel %vm184, %v739, %v738
      %v742 = vsel %vm120, %v736, %v741
      %v743 = vsel %vm121, %v737, %v740
      %v744 = vmax.f32 %v742, %v736
      %v745 = vmax.f32 %v743, %v737
      %v746 = vrot.slane %v736, 1
      %v747 = vrot.slane %v737, 1
      %v748 = vsel %vm193, %v746, %v747
      %v749 = vsel %vm193, %v747, %v746
      %v750 = vsel %vm122, %v736, %v748
      %v751 = vsel %vm123, %v737, %v749
      %v752 = vmax.f32 %v744, %v750
      %v753 = vmax.f32 %v745, %v751
      %754 = vrot.lane.b32.xlu0 %v752, 1
      %v755 = vpop.permute.xlu0 %754
      %756 = vrot.lane.b32.xlu0 %v753, 1
      %v757 = vpop.permute.xlu0 %756
      %v758 = vsel %vm136, %v752, %v755
      %v759 = vsel %vm136, %v753, %v757
      %v760 = vmax.f32 %v758, %v752
      %v761 = vmax.f32 %v759, %v753
      %762 = vrot.lane.b32.xlu0 %v752, 127
      %v763 = vpop.permute.xlu0 %762
      %764 = vrot.lane.b32.xlu0 %v753, 127
      %v765 = vpop.permute.xlu0 %764
      %v766 = vsel %vm137, %v752, %v763
      %v767 = vsel %vm137, %v753, %v765
      %v768 = vmax.f32 %v760, %v766
      %v769 = vmax.f32 %v761, %v767
      %v770 = vsub.f32 %v670, %v768
      %v771 = vsub.f32 %v671, %v769
      %v772 = vmax.f32 %v770, 0.0
      %v773 = vmax.f32 %v771, 0.0
      %v774 = vmul.f32 %v714, %v772
      %v775 = vmul.f32 %v715, %v773
      %v776 = vsub.f32 %v772, %v774
      %v777 = vsub.f32 %v773, %v775
      %v778 = vmax.f32 %v776, 0.0
      %v779 = vmax.f32 %v777, 0.0
      %v780 = vadd.f32 %v714, %v778
      %v781 = vadd.f32 %v715, %v779
      %v782 = vmin.f32 %v742, %v736
      %v783 = vmin.f32 %v743, %v737
      %v784 = vmin.f32 %v782, %v750
      %v785 = vmin.f32 %v783, %v751
      %786 = vrot.lane.b32.xlu0 %v736, 1
      %v787 = vpop.permute.xlu0 %786
      %788 = vrot.lane.b32.xlu0 %v737, 1
      %v789 = vpop.permute.xlu0 %788
      %v790 = vsel %vm136, %v736, %v787
      %v791 = vsel %vm136, %v737, %v789
      %v792 = vmin.f32 %v790, %v736
      %v793 = vmin.f32 %v791, %v737
      %794 = vrot.lane.b32.xlu0 %v736, 127
      %v795 = vpop.permute.xlu0 %794
      %796 = vrot.lane.b32.xlu0 %v737, 127
      %v797 = vpop.permute.xlu0 %796
      %v798 = vsel %vm137, %v736, %v795
      %v799 = vsel %vm137, %v737, %v797
      %v800 = vmin.f32 %v792, %v798
      %v801 = vmin.f32 %v793, %v799
      %v802 = vmin.f32 %v784, %v800
      %v803 = vmin.f32 %v785, %v801
      %v804 = vrot.slane %v802, 7
      %v805 = vrot.slane %v803, 7
      %v806 = vsel %vm184, %v804, %v805
      %v807 = vsel %vm184, %v805, %v804
      %v808 = vsel %vm120, %v802, %v807
      %v809 = vsel %vm121, %v803, %v806
      %v810 = vmax.f32 %v808, %v802
      %v811 = vmax.f32 %v809, %v803
      %v812 = vrot.slane %v802, 1
      %v813 = vrot.slane %v803, 1
      %v814 = vsel %vm193, %v812, %v813
      %v815 = vsel %vm193, %v813, %v812
      %v816 = vsel %vm122, %v802, %v814
      %v817 = vsel %vm123, %v803, %v815
      %v818 = vmax.f32 %v810, %v816
      %v819 = vmax.f32 %v811, %v817
      %820 = vrot.lane.b32.xlu0 %v818, 1
      %v821 = vpop.permute.xlu0 %820
      %822 = vrot.lane.b32.xlu0 %v819, 1
      %v823 = vpop.permute.xlu0 %822
      %v824 = vsel %vm136, %v818, %v821
      %v825 = vsel %vm136, %v819, %v823
      %v826 = vmax.f32 %v824, %v818
      %v827 = vmax.f32 %v825, %v819
      %828 = vrot.lane.b32.xlu0 %v818, 127
      %v829 = vpop.permute.xlu0 %828
      %830 = vrot.lane.b32.xlu0 %v819, 127
      %v831 = vpop.permute.xlu0 %830
      %v832 = vsel %vm137, %v818, %v829
      %v833 = vsel %vm137, %v819, %v831
      %v834 = vmax.f32 %v826, %v832
      %v835 = vmax.f32 %v827, %v833
      %v836 = vsub.f32 %v736, %v834
      %v837 = vsub.f32 %v737, %v835
      %v838 = vmax.f32 %v836, 0.0
      %v839 = vmax.f32 %v837, 0.0
      %v840 = vmul.f32 %v780, %v838
      %v841 = vmul.f32 %v781, %v839
      %v842 = vsub.f32 %v838, %v840
      %v843 = vsub.f32 %v839, %v841
      %v844 = vmax.f32 %v842, 0.0
      %v845 = vmax.f32 %v843, 0.0
      %v846 = vadd.f32 %v780, %v844
      %v847 = vadd.f32 %v781, %v845
      %v848 = vmin.f32 %v808, %v802
      %v849 = vmin.f32 %v809, %v803
      %v850 = vmin.f32 %v848, %v816
      %v851 = vmin.f32 %v849, %v817
      %852 = vrot.lane.b32.xlu0 %v802, 1
      %v853 = vpop.permute.xlu0 %852
      %854 = vrot.lane.b32.xlu0 %v803, 1
      %v855 = vpop.permute.xlu0 %854
      %v856 = vsel %vm136, %v802, %v853
      %v857 = vsel %vm136, %v803, %v855
      %v858 = vmin.f32 %v856, %v802
      %v859 = vmin.f32 %v857, %v803
      %860 = vrot.lane.b32.xlu0 %v802, 127
      %v861 = vpop.permute.xlu0 %860
      %862 = vrot.lane.b32.xlu0 %v803, 127
      %v863 = vpop.permute.xlu0 %862
      %v864 = vsel %vm137, %v802, %v861
      %v865 = vsel %vm137, %v803, %v863
      %v866 = vmin.f32 %v858, %v864
      %v867 = vmin.f32 %v859, %v865
      %v868 = vmin.f32 %v850, %v866
      %v869 = vmin.f32 %v851, %v867
      %v870 = vrot.slane %v868, 7
      %v871 = vrot.slane %v869, 7
      %v872 = vsel %vm184, %v870, %v871
      %v873 = vsel %vm184, %v871, %v870
      %v874 = vsel %vm120, %v868, %v873
      %v875 = vsel %vm121, %v869, %v872
      %v876 = vmax.f32 %v874, %v868
      %v877 = vmax.f32 %v875, %v869
      %v878 = vrot.slane %v868, 1
      %v879 = vrot.slane %v869, 1
      %v880 = vsel %vm193, %v878, %v879
      %v881 = vsel %vm193, %v879, %v878
      %v882 = vsel %vm122, %v868, %v880
      %v883 = vsel %vm123, %v869, %v881
      %v884 = vmax.f32 %v876, %v882
      %v885 = vmax.f32 %v877, %v883
      %886 = vrot.lane.b32.xlu0 %v884, 1
      %v887 = vpop.permute.xlu0 %886
      %888 = vrot.lane.b32.xlu0 %v885, 1
      %v889 = vpop.permute.xlu0 %888
      %v890 = vsel %vm136, %v884, %v887
      %v891 = vsel %vm136, %v885, %v889
      %v892 = vmax.f32 %v890, %v884
      %v893 = vmax.f32 %v891, %v885
      %894 = vrot.lane.b32.xlu0 %v884, 127
      %v895 = vpop.permute.xlu0 %894
      %896 = vrot.lane.b32.xlu0 %v885, 127
      %v897 = vpop.permute.xlu0 %896
      %v898 = vsel %vm137, %v884, %v895
      %v899 = vsel %vm137, %v885, %v897
      %v900 = vmax.f32 %v892, %v898
      %v901 = vmax.f32 %v893, %v899
      %v902 = vsub.f32 %v802, %v900
      %v903 = vsub.f32 %v803, %v901
      %v904 = vmax.f32 %v902, 0.0
      %v905 = vmax.f32 %v903, 0.0
      %v906 = vmul.f32 %v846, %v904
      %v907 = vmul.f32 %v847, %v905
      %v908 = vsub.f32 %v904, %v906
      %v909 = vsub.f32 %v905, %v907
      %v910 = vmax.f32 %v908, 0.0
      %v911 = vmax.f32 %v909, 0.0
      %v912 = vadd.f32 %v846, %v910
      %v913 = vadd.f32 %v847, %v911
      %v914 = vmul.f32 %v912, %v143
      %v915 = vmul.f32 %v913, %v145
      %v916 = vsel %vm171, %v914, 0.0
      %v917 = vsel %vm171, %v915, 0.0
      %v918 = vadd.f32 %v916, %v917
      %v919 = vrot.slane %v918, 4
      %v920 = vadd.f32 %v918, %v919
      %v921 = vrot.slane %v920, 2
      %v922 = vadd.f32 %v920, %v921
      %v923 = vrot.slane %v922, 1
      %v924 = vadd.f32 %v922, %v923
      %v925 = vadd.f32 %v924, 0.0
      %v926 = vsel %vm171, %v912, 0.0
      %v927 = vsel %vm171, %v913, 0.0
      %v928 = vadd.f32 %v926, %v927
      %v929 = vrot.slane %v928, 4
      %v930 = vadd.f32 %v928, %v929
      %v931 = vrot.slane %v930, 2
      %v932 = vadd.f32 %v930, %v931
      %v933 = vrot.slane %v932, 1
      %v934 = vadd.f32 %v932, %v933
      %v935 = vadd.f32 %v934, 0.0
      %v936 = vsel %vm150, %v914, 0.0
      %v937 = vsel %vm150, %v915, 0.0
      %v938 = vadd.f32 %v936, %v937
      %v939 = vrot.slane %v938, 4
      %v940 = vadd.f32 %v938, %v939
      %v941 = vrot.slane %v940, 2
      %v942 = vadd.f32 %v940, %v941
      %v943 = vrot.slane %v942, 1
      %v944 = vadd.f32 %v942, %v943
      %v945 = vadd.f32 %v944, 0.0
      %v946 = vsel %vm150, %v912, 0.0
      %v947 = vsel %vm150, %v913, 0.0
      %v948 = vadd.f32 %v946, %v947
      %v949 = vrot.slane %v948, 4
      %v950 = vadd.f32 %v948, %v949
      %v951 = vrot.slane %v950, 2
      %v952 = vadd.f32 %v950, %v951
      %v953 = vrot.slane %v952, 1
      %v954 = vadd.f32 %v952, %v953
      %v955 = vadd.f32 %v954, 0.0
      %957 = vrot.lane.b32.xlu0 %v181, 64
      %v958 = vpop.permute.xlu0 %957
      %961 = vrot.lane.b32.xlu0 %v925, 64
      %v962 = vpop.permute.xlu0 %961
      %965 = vrot.lane.b32.xlu0 %v935, 64
      %v966 = vpop.permute.xlu0 %965
      %vm968 = vcmask 1040384
      %v969 = vsel %vm968, %v160, %v170
      %vm970 = vcmask 1041408
      %v971 = vsel %vm970, %v969, %v958
      %vm972 = vcmask 1042432
      %v973 = vsel %vm972, %v971, %v962
      %vm974 = vcmask 1043456
      %v975 = vsel %vm974, %v973, %v966
      %vm976 = vcmask 1044480
      %v977 = vsel %vm976, %v975, %v945
      %vm978 = vcmask 1045504
      %v979 = vsel %vm978, %v977, %v955
      %vm980 = vcmask 1046528
      %v981 = vsel %vm980, %v979, 0.0
      %v982 = vsel %vm150, %v981, 0.0
      %983 = vst [vmem:[%s114] sm:$0xff] %v982
      %p984 = scmp.lt.s32.totalorder %s12, 1
      %s985 = scalar_select %p984, %s12, 1
      %s986 = smul.addr %s985, 8
      %s987 = scalar_lea.vmem %s1, %s986
      // Predicated region
      $region25: #{soft_dice_cldice_loss.1} parent=23 // pred_check
        %p988 = pneg %p56
      $region26: #{soft_dice_cldice_loss.1} parent=23 // pred_check_branch
        %990 = sbr.rel (%p988) target = $region28
      $region27: #{soft_dice_cldice_loss.1} parent=23 // pred_region
        _
      $region28: #{soft_dice_cldice_loss.1} parent=23 // pred_fallthru
        _
    $region24: #{soft_dice_cldice_loss.1} parent=5 // pred_fallthru
      _
    %p991 = scmp.le.s32.totalorder 2, %s7
    // Predicated region
    $region29: #{soft_dice_cldice_loss.1} parent=5 // pred_check
      %p992 = pneg %p991
    $region30: #{soft_dice_cldice_loss.1} parent=5 // pred_check_branch
      %994 = sbr.rel (%p992) target = $region32
    $region31: #{soft_dice_cldice_loss.1} parent=5 // pred_region
      %s995 = ssub.s32 %s7, 2
      // Predicated region
      $region33: #{soft_dice_cldice_loss.1} parent=31 // pred_check
        %p996 = pneg %p62
      $region34: #{soft_dice_cldice_loss.1} parent=31 // pred_check_branch
        %998 = sbr.rel (%p996) target = $region36
      $region35: #{soft_dice_cldice_loss.1} parent=31 // pred_region
        %p999 = scmp.lt.s32.totalorder %s13, 1
        %s1000 = scalar_select %p999, %s13, 1
        %s1001 = smul.addr %s1000, 8
        %s1002 = scalar_lea.vmem %s1, %s1001
      $region36: #{soft_dice_cldice_loss.1} parent=31 // pred_fallthru
        _
    $region32: #{soft_dice_cldice_loss.1} parent=5 // pred_fallthru
      _
  $region6: #{soft_dice_cldice_loss.1} parent=0 // loop_footer
    %s11 = sadd.s32 1, %s7
  $region7: #{soft_dice_cldice_loss.1} parent=0 // loop_footer_branch
    %6 = sbr.rel target = $region3
  $region8: #{soft_dice_cldice_loss.1} parent=0 // loop_exit
    _

</llo_original>
